<compile_context>
chip_gen: v7x
topology: tpu7x:2x2x1
jax: 0.10.0
libtpu: 0.0.40
codegen_flags: <defaults>
</compile_context>

<pallas_src>
import jax
import jax.numpy as jnp
from jax.experimental import pallas as pl
from jax.experimental.pallas import tpu as pltpu

LANE = 128


# --------------------------------------------------------------------------
# Device-dependent Swish precision (bf16 EUP/VPU exists on v6e/v7x, not <=v5e)
# --------------------------------------------------------------------------
def _swish_dtype():
    try:
        kind = jax.devices()[0].device_kind.lower()
    except Exception:
        return jnp.float32
    if any(v in kind for v in ("v2", "v3", "v4", "v5")):
        return jnp.float32          # no bf16 VPU/EUP on <= v5e
    return jnp.bfloat16             # v6e / v7x: halves EUP vreg traffic


# --------------------------------------------------------------------------
# Fused kernel: stem conv -> Swish -> 1x1 conv_head -> Swish -> GAP
#               -> meta MLP -> concat -> myfc   (all in one pallas_call)
# --------------------------------------------------------------------------
def _make_fused_kernel(inv_hw, swish_dtype):
    def swish(z):
        zc = z.astype(swish_dtype)
        return zc * jax.nn.sigmoid(zc)

    def kernel(x_ref, xmeta_ref,
               w1_ref, t1_ref, w2_ref, t2_ref,
               mw1_ref, mt1_ref, mw2_ref, mt2_ref,
               fwf_ref, fwm_ref, fb_ref,
               o_ref, acc_ref):
        s = pl.program_id(1)                         # spatial reduction axis

        @pl.when(s == 0)
        def _init():
            acc_ref[...] = jnp.zeros_like(acc_ref)

        bt, T, K1 = x_ref.shape
        C2 = acc_ref.shape[1]

        # One big-M matmul per layer (no per-batch-row unroll).
        x = x_ref[...].reshape(bt * T, K1)                       # bf16
        # stem 3x3/s2 conv as matmul; BN scale folded into w1, shift kept.
        z1 = jnp.dot(x, w1_ref[...], preferred_element_type=jnp.float32)
        h1 = swish(z1 + t1_ref[...])
        # 1x1 conv_head; BN scale folded into w2.
        z2 = jnp.dot(h1.astype(jnp.bfloat16), w2_ref[...],
                     preferred_element_type=jnp.float32)
        h2 = swish(z2 + t2_ref[...])
        # Partial global-average-pool: one full-block f32 accumulator RMW.
        acc_ref[...] += jnp.sum(
            h2.astype(jnp.float32).reshape(bt, T, C2), axis=1)

        @pl.when(s == pl.num_programs(1) - 1)
        def _finalize():
            feats = acc_ref[...] * inv_hw                        # (bt, C2) f32
            # meta branch: Linear(+bias folded) -> BN1d -> Swish, twice.
            xm = xmeta_ref[...].astype(jnp.bfloat16)             # (bt, n_meta)
            zm1 = jnp.dot(xm, mw1_ref[...],
                          preferred_element_type=jnp.float32)
            hm1 = swish(zm1 + mt1_ref[...])
            # Dropout(p=0.3) is identity at inference.
            zm2 = jnp.dot(hm1.astype(jnp.bfloat16), mw2_ref[...],
                          preferred_element_type=jnp.float32)
            hm2 = swish(zm2 + mt2_ref[...])
            # concat([feats, meta]) @ fc_w  ==  feats @ fc_w[:C2] + meta @ fc_w[C2:]
            # (the 5 dropout passes average identical logits at inference)
            logits = (jnp.dot(feats.astype(jnp.bfloat16), fwf_ref[...],
                              preferred_element_type=jnp.float32)
                      + jnp.dot(hm2.astype(jnp.bfloat16), fwm_ref[...],
                                preferred_element_type=jnp.float32)
                      + fb_ref[...])
            o_ref[...] = logits                                  # lane-dense store

    return kernel


# --------------------------------------------------------------------------
# Tiling helpers
# --------------------------------------------------------------------------
def _pick_batch_tile(B):
    # Output block is (bt, OUTP): bt must be a multiple of 8 or the full batch.
    return 8 if B % 8 == 0 else B


def _pick_tile(total, max_tile):
    """Largest divisor of `total` <= max_tile that keeps the BlockSpec legal.

    Prefers multiples of 16 (layout-trivial bf16 reshape), then 8; falls back
    to the full extent (always legal)."""
    if total <= max_tile:
        return total
    for m in (16, 8):
        top = max_tile - (max_tile % m)
        for t in range(top, m - 1, -m):
            if total % t == 0:
                return t
    return total


# --------------------------------------------------------------------------
# pallas_call wrapper
# --------------------------------------------------------------------------
def effnet_fused_call(patches, x_meta, p):
    """patches (B, HW, K1) bf16 + x_meta (B, n_meta) -> padded logits (B, OUTP)."""
    B, HW, K1 = patches.shape
    C2 = p["headc_w"].shape[1]
    OUTP = p["fc_w_feat"].shape[1]
    n_meta = x_meta.shape[-1]

    bt = _pick_batch_tile(B)                       # parallel (megacore) axis
    max_tile = max(8, min(2048, 4096 // bt))       # keep bt*T <= 4096 rows
    T = _pick_tile(HW, max_tile)                   # spatial reduction tile
    grid = (B // bt, HW // T)
    inv_hw = 1.0 / float(HW)

    kernel = _make_fused_kernel(inv_hw, _swish_dtype())
    const = lambda bi, s: (0, 0)                   # resident weights / params

    out = pl.pallas_call(
        kernel,
        out_shape=jax.ShapeDtypeStruct((B, OUTP), jnp.float32),
        grid=grid,
        in_specs=[
            pl.BlockSpec((bt, T, K1), lambda bi, s: (bi, s, 0)),   # im2col rows
            pl.BlockSpec((bt, n_meta), lambda bi, s: (bi, 0)),     # meta features
            pl.BlockSpec(p["stem_w"].shape, const),
            pl.BlockSpec(p["stem_shift"].shape, const),
            pl.BlockSpec(p["headc_w"].shape, const),
            pl.BlockSpec(p["headc_shift"].shape, const),
            pl.BlockSpec(p["meta1_w"].shape, const),
            pl.BlockSpec(p["meta1_shift"].shape, const),
            pl.BlockSpec(p["meta2_w"].shape, const),
            pl.BlockSpec(p["meta2_shift"].shape, const),
            pl.BlockSpec(p["fc_w_feat"].shape, const),
            pl.BlockSpec(p["fc_w_meta"].shape, const),
            pl.BlockSpec(p["fc_b"].shape, const),
        ],
        out_specs=pl.BlockSpec((bt, OUTP), lambda bi, s: (bi, 0)),
        scratch_shapes=[pltpu.VMEM((bt, C2), jnp.float32)],        # GAP accumulator
        compiler_params=pltpu.CompilerParams(
            dimension_semantics=("parallel", "arbitrary"),
            vmem_limit_bytes=32 * 1024 * 1024),
    )(patches, x_meta.astype(jnp.float32),
      p["stem_w"], p["stem_shift"], p["headc_w"], p["headc_shift"],
      p["meta1_w"], p["meta1_shift"], p["meta2_w"], p["meta2_shift"],
      p["fc_w_feat"], p["fc_w_meta"], p["fc_b"])
    return out


# --------------------------------------------------------------------------
# Glue: im2col (pure JAX reshuffle, emitted in bf16)
# --------------------------------------------------------------------------
def im2col_nhwc(x, ksize, stride, pad):
    """NHWC -> (B, Ho*Wo, k*k*C) patches, tap-major / channel-minor, bf16."""
    xp = jnp.pad(x, ((0, 0), (pad, pad), (pad, pad), (0, 0)))
    b, hp, wp, c = xp.shape
    ho = (hp - ksize) // stride + 1
    wo = (wp - ksize) // stride + 1
    taps = []
    for dy in range(ksize):
        for dx in range(ksize):
            taps.append(
                xp[:, dy:dy + ho * stride:stride, dx:dx + wo * stride:stride, :])
    pch = jnp.concatenate(taps, axis=-1)               # (B, Ho, Wo, k*k*C)
    # NOTE: real pretrained stem weights (out,in,kh,kw) must be permuted to
    # this (dy, dx, c) x out layout before being loaded into stem_w.
    return pch.reshape(b, ho * wo, ksize * ksize * c).astype(jnp.bfloat16), ho, wo


# --------------------------------------------------------------------------
# Parameters (deterministic synthetic init; BN scale folded into weights,
# BN shift + linear bias kept as a shift vector; only logits lane-padded)
# --------------------------------------------------------------------------
def fold_bn(gamma, beta, mean, var, eps, lin_bias=None):
    scale = gamma * jax.lax.rsqrt(var + eps)
    shift = beta - mean * scale
    if lin_bias is not None:
        shift = shift + lin_bias * scale               # fold linear bias
    return scale, shift


def _round_up(n, m):
    return ((n + m - 1) // m) * m


def _pad_cols(x, cols):
    return jnp.pad(x, ((0, 0), (0, cols - x.shape[1])))


def init_params(key, in_ch_img=3, stem_ch=32, feat_ch=256,
                n_meta_features=8, n_meta_dim=(32, 16), out_dim=9):
    ks = jax.random.split(key, 20)

    def nrm(k, shape, s=0.1):
        return jax.random.normal(k, shape, jnp.float32) * s

    k1 = 3 * 3 * in_ch_img
    d1, d2 = n_meta_dim
    outp = _round_up(out_dim, LANE)
    p = {}

    # ----- backbone stand-in (self.enet, classifier = Identity) -----
    stem_w = nrm(ks[0], (k1, stem_ch))                              # conv, no bias
    sc, sh = fold_bn(1.0 + nrm(ks[1], (stem_ch,), 0.05),
                     nrm(ks[2], (stem_ch,), 0.05),
                     nrm(ks[3], (stem_ch,), 0.05),
                     1.0 + jnp.abs(nrm(ks[4], (stem_ch,), 0.05)), eps=1e-3)
    p["stem_w"] = (stem_w * sc[None, :]).astype(jnp.bfloat16)       # scale folded
    p["stem_shift"] = sh.reshape(1, stem_ch)

    headc_w = nrm(ks[5], (stem_ch, feat_ch))                        # 1x1 conv_head
    sc, sh = fold_bn(1.0 + nrm(ks[6], (feat_ch,), 0.05),
                     nrm(ks[7], (feat_ch,), 0.05),
                     nrm(ks[8], (feat_ch,), 0.05),
                     1.0 + jnp.abs(nrm(ks[9], (feat_ch,), 0.05)), eps=1e-3)
    p["headc_w"] = (headc_w * sc[None, :]).astype(jnp.bfloat16)     # K stays 32
    p["headc_shift"] = sh.reshape(1, feat_ch)

    # ----- meta branch (Linear bias folded into BN shift, natural widths) -----
    m1_w = nrm(ks[10], (n_meta_features, d1))
    m1_b = nrm(ks[11], (d1,), 0.05)
    sc, sh = fold_bn(jnp.ones((d1,)), jnp.zeros((d1,)),
                     nrm(ks[12], (d1,), 0.05),
                     1.0 + jnp.abs(nrm(ks[13], (d1,), 0.05)), eps=1e-5,
                     lin_bias=m1_b)
    p["meta1_w"] = (m1_w * sc[None, :]).astype(jnp.bfloat16)
    p["meta1_shift"] = sh.reshape(1, d1)

    m2_w = nrm(ks[14], (d1, d2))
    m2_b = nrm(ks[15], (d2,), 0.05)
    sc, sh = fold_bn(jnp.ones((d2,)), jnp.zeros((d2,)),
                     nrm(ks[16], (d2,), 0.05),
                     1.0 + jnp.abs(nrm(ks[17], (d2,), 0.05)), eps=1e-5,
                     lin_bias=m2_b)
    p["meta2_w"] = (m2_w * sc[None, :]).astype(jnp.bfloat16)
    p["meta2_shift"] = sh.reshape(1, d2)

    # ----- myfc, split for the fused concat (feats | meta); only the
    #       HBM-visible logits last dim is lane-padded to 128 -----
    fc_w = nrm(ks[18], (feat_ch + d2, out_dim))
    fc_b = nrm(ks[19], (out_dim,), 0.05)
    p["fc_w_feat"] = _pad_cols(fc_w[:feat_ch], outp).astype(jnp.bfloat16)
    p["fc_w_meta"] = _pad_cols(fc_w[feat_ch:], outp).astype(jnp.bfloat16)
    p["fc_b"] = jnp.pad(fc_b, (0, outp - out_dim)).reshape(1, outp)
    return p


# --------------------------------------------------------------------------
# Forward pass (Effnet_Melanoma.forward, eval mode)
# --------------------------------------------------------------------------
def effnet_melanoma_forward(params, x_nchw, x_meta, out_dim=9):
    x = jnp.transpose(x_nchw, (0, 2, 3, 1)).astype(jnp.float32)    # NCHW -> NHWC

    # self.enet(x) (stem + conv_head + GAP) fused with the meta branch,
    # concat and myfc in a single pallas_call.
    patches, ho, wo = im2col_nhwc(x, ksize=3, stride=2, pad=1)     # (B, HW, 27) bf16
    logits_padded = effnet_fused_call(patches, x_meta, params)     # (B, 128) f32
    return logits_padded[:, :out_dim]


# --------------------------------------------------------------------------
if __name__ == "__main__":
    key = jax.random.PRNGKey(0)
    k_img, k_meta, k_par = jax.random.split(key, 3)

    B, C, H, W = 2, 3, 16, 16
    N_META = 8
    OUT_DIM = 9
    x = jax.random.normal(k_img, (B, C, H, W), jnp.float32)
    x_meta = jax.random.normal(k_meta, (B, N_META), jnp.float32)

    params = init_params(k_par, in_ch_img=C, stem_ch=32, feat_ch=256,
                         n_meta_features=N_META, n_meta_dim=(32, 16),
                         out_dim=OUT_DIM)

    out = effnet_melanoma_forward(params, x, x_meta, out_dim=OUT_DIM)
    out = jax.block_until_ready(out)
    assert out.shape == (B, OUT_DIM), out.shape
    print("KERNEL_OK")
</pallas_src>

<mosaic_0001>
module attributes {stable_mosaic.version = 11 : i64} {
  func.func @kernel(%arg0: i32, %arg1: i32, %arg2: memref<2x64x27xbf16, #tpu.memory_space<vmem>>, %arg3: memref<2x8xf32, #tpu.memory_space<vmem>>, %arg4: memref<27x32xbf16, #tpu.memory_space<vmem>>, %arg5: memref<1x32xf32, #tpu.memory_space<vmem>>, %arg6: memref<32x256xbf16, #tpu.memory_space<vmem>>, %arg7: memref<1x256xf32, #tpu.memory_space<vmem>>, %arg8: memref<8x32xbf16, #tpu.memory_space<vmem>>, %arg9: memref<1x32xf32, #tpu.memory_space<vmem>>, %arg10: memref<32x16xbf16, #tpu.memory_space<vmem>>, %arg11: memref<1x16xf32, #tpu.memory_space<vmem>>, %arg12: memref<256x128xbf16, #tpu.memory_space<vmem>>, %arg13: memref<16x128xbf16, #tpu.memory_space<vmem>>, %arg14: memref<1x128xf32, #tpu.memory_space<vmem>>, %arg15: memref<2x128xf32, #tpu.memory_space<vmem>>, %arg16: memref<2x256xf32, #tpu.memory_space<vmem>>) attributes {dimension_semantics = [#tpu.dimension_semantics<parallel>, #tpu.dimension_semantics<arbitrary>], iteration_bounds = array<i64: 1, 1>, scalar_prefetch = 0 : i64, scratch_operands = 1 : i64, tpu.core_type = #tpu.core_type<tc>, window_params = [{transform_indices = @transform_0, window_bounds = array<i64: 2, 64, 27>}, {transform_indices = @transform_1, window_bounds = array<i64: 2, 8>}, {pipeline_mode = #tpu.pipeline_mode<synchronous>, transform_indices = @transform_2, window_bounds = array<i64: 27, 32>}, {pipeline_mode = #tpu.pipeline_mode<synchronous>, transform_indices = @transform_3, window_bounds = array<i64: 1, 32>}, {pipeline_mode = #tpu.pipeline_mode<synchronous>, transform_indices = @transform_4, window_bounds = array<i64: 32, 256>}, {pipeline_mode = #tpu.pipeline_mode<synchronous>, transform_indices = @transform_5, window_bounds = array<i64: 1, 256>}, {pipeline_mode = #tpu.pipeline_mode<synchronous>, transform_indices = @transform_6, window_bounds = array<i64: 8, 32>}, {pipeline_mode = #tpu.pipeline_mode<synchronous>, transform_indices = @transform_7, window_bounds = array<i64: 1, 32>}, {pipeline_mode = #tpu.pipeline_mode<synchronous>, transform_indices = @transform_8, window_bounds = array<i64: 32, 16>}, {pipeline_mode = #tpu.pipeline_mode<synchronous>, transform_indices = @transform_9, window_bounds = array<i64: 1, 16>}, {pipeline_mode = #tpu.pipeline_mode<synchronous>, transform_indices = @transform_10, window_bounds = array<i64: 256, 128>}, {pipeline_mode = #tpu.pipeline_mode<synchronous>, transform_indices = @transform_11, window_bounds = array<i64: 16, 128>}, {pipeline_mode = #tpu.pipeline_mode<synchronous>, transform_indices = @transform_12, window_bounds = array<i64: 1, 128>}, {transform_indices = @transform_13, window_bounds = array<i64: 2, 128>}]} {
    %c0_i32 = arith.constant 0 : i32
    %0 = arith.cmpi eq, %arg1, %c0_i32 : i32
    %1 = arith.extui %0 : i1 to i32
    %c0_i32_0 = arith.constant 0 : i32
    %2 = arith.cmpi ne, %1, %c0_i32_0 : i32
    scf.if %2 {
      %cst_21 = arith.constant 0.000000e+00 : f32
      %38 = vector.broadcast %cst_21 : f32 to vector<2x256xf32>
      %c0_22 = arith.constant 0 : index
      %c0_23 = arith.constant 0 : index
      %39 = vector.load %arg16[%c0_22, %c0_23] : memref<2x256xf32, #tpu.memory_space<vmem>>, vector<2x256xf32>
      tpu.vector_store %arg16[%c0_22, %c0_23], %38 {strides = array<i32>} : memref<2x256xf32, #tpu.memory_space<vmem>>, vector<2x256xf32>,
    } else {
    }
    %c0 = arith.constant 0 : index
    %c0_1 = arith.constant 0 : index
    %c0_2 = arith.constant 0 : index
    %3 = vector.load %arg2[%c0, %c0_1, %c0_2] : memref<2x64x27xbf16, #tpu.memory_space<vmem>>, vector<2x64x27xbf16>
    %4 = vector.shape_cast %3 : vector<2x64x27xbf16> to vector<128x27xbf16>
    %c0_3 = arith.constant 0 : index
    %c0_4 = arith.constant 0 : index
    %5 = vector.load %arg4[%c0_3, %c0_4] : memref<27x32xbf16, #tpu.memory_space<vmem>>, vector<27x32xbf16>
    %cst = arith.constant dense<0.000000e+00> : vector<128x32xf32>
    %6 = tpu.matmul %4, %5, %cst {dimension_numbers = #tpu.dot_dimension_numbers<[1], [0], [0], [1], [0, 0, 1, 1], [], []>} : vector<128x27xbf16>, vector<27x32xbf16>, vector<128x32xf32> -> vector<128x32xf32>
    %c0_5 = arith.constant 0 : index
    %c0_6 = arith.constant 0 : index
    %7 = vector.load %arg5[%c0_5, %c0_6] : memref<1x32xf32, #tpu.memory_space<vmem>>, vector<1x32xf32>
    %8 = vector.broadcast %7 : vector<1x32xf32> to vector<128x32xf32>
    %9 = arith.addf %6, %8 : vector<128x32xf32>
    %10 = arith.truncf %9 : vector<128x32xf32> to vector<128x32xbf16>
    %11 = arith.negf %10 : vector<128x32xbf16>
    %12 = math.exp %11 : vector<128x32xbf16>
    %cst_7 = arith.constant 1.000000e+00 : bf16
    %13 = vector.broadcast %cst_7 : bf16 to vector<128x32xbf16>
    %14 = arith.addf %13, %12 : vector<128x32xbf16>
    %15 = arith.divf %13, %14 : vector<128x32xbf16>
    %16 = arith.mulf %10, %15 : vector<128x32xbf16>
    %c0_8 = arith.constant 0 : index
    %c0_9 = arith.constant 0 : index
    %17 = vector.load %arg6[%c0_8, %c0_9] : memref<32x256xbf16, #tpu.memory_space<vmem>>, vector<32x256xbf16>
    %cst_10 = arith.constant dense<0.000000e+00> : vector<128x256xf32>
    %18 = tpu.matmul %16, %17, %cst_10 {dimension_numbers = #tpu.dot_dimension_numbers<[1], [0], [0], [1], [0, 0, 1, 1], [], []>} : vector<128x32xbf16>, vector<32x256xbf16>, vector<128x256xf32> -> vector<128x256xf32>
    %c0_11 = arith.constant 0 : index
    %c0_12 = arith.constant 0 : index
    %19 = vector.load %arg7[%c0_11, %c0_12] : memref<1x256xf32, #tpu.memory_space<vmem>>, vector<1x256xf32>
    %20 = vector.broadcast %19 : vector<1x256xf32> to vector<128x256xf32>
    %21 = arith.addf %18, %20 : vector<128x256xf32>
    %22 = arith.truncf %21 : vector<128x256xf32> to vector<128x256xbf16>
    %23 = arith.negf %22 : vector<128x256xbf16>
    %24 = math.exp %23 : vector<128x256xbf16>
    %cst_13 = arith.constant 1.000000e+00 : bf16
    %25 = vector.broadcast %cst_13 : bf16 to vector<128x256xbf16>
    %26 = arith.addf %25, %24 : vector<128x256xbf16>
    %27 = arith.divf %25, %26 : vector<128x256xbf16>
    %28 = arith.mulf %22, %27 : vector<128x256xbf16>
    %c0_14 = arith.constant 0 : index
    %c0_15 = arith.constant 0 : index
    %29 = vector.load %arg16[%c0_14, %c0_15] : memref<2x256xf32, #tpu.memory_space<vmem>>, vector<2x256xf32>
    %30 = arith.extf %28 : vector<128x256xbf16> to vector<128x256xf32>
    %31 = vector.shape_cast %30 : vector<128x256xf32> to vector<2x64x256xf32>
    %cst_16 = arith.constant dense<0.000000e+00> : vector<2x256xf32>
    %32 = vector.multi_reduction <add>, %31, %cst_16 [1] : vector<2x64x256xf32> to vector<2x256xf32>
    %33 = arith.addf %29, %32 : vector<2x256xf32>
    %c0_17 = arith.constant 0 : index
    %c0_18 = arith.constant 0 : index
    %34 = vector.load %arg16[%c0_17, %c0_18] : memref<2x256xf32, #tpu.memory_space<vmem>>, vector<2x256xf32>
    tpu.vector_store %arg16[%c0_17, %c0_18], %33 {strides = array<i32>} : memref<2x256xf32, #tpu.memory_space<vmem>>, vector<2x256xf32>,
    %c0_i32_19 = arith.constant 0 : i32
    %35 = arith.cmpi eq, %arg1, %c0_i32_19 : i32
    %36 = arith.extui %35 : i1 to i32
    %c0_i32_20 = arith.constant 0 : i32
    %37 = arith.cmpi ne, %36, %c0_i32_20 : i32
    scf.if %37 {
      %c0_21 = arith.constant 0 : index
      %c0_22 = arith.constant 0 : index
      %38 = vector.load %arg16[%c0_21, %c0_22] : memref<2x256xf32, #tpu.memory_space<vmem>>, vector<2x256xf32>
      %cst_23 = arith.constant 1.562500e-02 : f32
      %39 = vector.broadcast %cst_23 : f32 to vector<2x256xf32>
      %40 = arith.mulf %38, %39 : vector<2x256xf32>
      %c0_24 = arith.constant 0 : index
      %c0_25 = arith.constant 0 : index
      %41 = vector.load %arg3[%c0_24, %c0_25] : memref<2x8xf32, #tpu.memory_space<vmem>>, vector<2x8xf32>
      %42 = arith.truncf %41 : vector<2x8xf32> to vector<2x8xbf16>
      %c0_26 = arith.constant 0 : index
      %c0_27 = arith.constant 0 : index
      %43 = vector.load %arg8[%c0_26, %c0_27] : memref<8x32xbf16, #tpu.memory_space<vmem>>, vector<8x32xbf16>
      %cst_28 = arith.constant dense<0.000000e+00> : vector<2x32xf32>
      %44 = tpu.matmul %42, %43, %cst_28 {dimension_numbers = #tpu.dot_dimension_numbers<[1], [0], [0], [1], [0, 0, 1, 1], [], []>} : vector<2x8xbf16>, vector<8x32xbf16>, vector<2x32xf32> -> vector<2x32xf32>
      %c0_29 = arith.constant 0 : index
      %c0_30 = arith.constant 0 : index
      %45 = vector.load %arg9[%c0_29, %c0_30] : memref<1x32xf32, #tpu.memory_space<vmem>>, vector<1x32xf32>
      %46 = vector.broadcast %45 : vector<1x32xf32> to vector<2x32xf32>
      %47 = arith.addf %44, %46 : vector<2x32xf32>
      %48 = arith.truncf %47 : vector<2x32xf32> to vector<2x32xbf16>
      %49 = arith.negf %48 : vector<2x32xbf16>
      %50 = math.exp %49 : vector<2x32xbf16>
      %cst_31 = arith.constant 1.000000e+00 : bf16
      %51 = vector.broadcast %cst_31 : bf16 to vector<2x32xbf16>
      %52 = arith.addf %51, %50 : vector<2x32xbf16>
      %53 = arith.divf %51, %52 : vector<2x32xbf16>
      %54 = arith.mulf %48, %53 : vector<2x32xbf16>
      %c0_32 = arith.constant 0 : index
      %c0_33 = arith.constant 0 : index
      %55 = vector.load %arg10[%c0_32, %c0_33] : memref<32x16xbf16, #tpu.memory_space<vmem>>, vector<32x16xbf16>
      %cst_34 = arith.constant dense<0.000000e+00> : vector<2x16xf32>
      %56 = tpu.matmul %54, %55, %cst_34 {dimension_numbers = #tpu.dot_dimension_numbers<[1], [0], [0], [1], [0, 0, 1, 1], [], []>} : vector<2x32xbf16>, vector<32x16xbf16>, vector<2x16xf32> -> vector<2x16xf32>
      %c0_35 = arith.constant 0 : index
      %c0_36 = arith.constant 0 : index
      %57 = vector.load %arg11[%c0_35, %c0_36] : memref<1x16xf32, #tpu.memory_space<vmem>>, vector<1x16xf32>
      %58 = vector.broadcast %57 : vector<1x16xf32> to vector<2x16xf32>
      %59 = arith.addf %56, %58 : vector<2x16xf32>
      %60 = arith.truncf %59 : vector<2x16xf32> to vector<2x16xbf16>
      %61 = arith.negf %60 : vector<2x16xbf16>
      %62 = math.exp %61 : vector<2x16xbf16>
      %cst_37 = arith.constant 1.000000e+00 : bf16
      %63 = vector.broadcast %cst_37 : bf16 to vector<2x16xbf16>
      %64 = arith.addf %63, %62 : vector<2x16xbf16>
      %65 = arith.divf %63, %64 : vector<2x16xbf16>
      %66 = arith.mulf %60, %65 : vector<2x16xbf16>
      %67 = arith.truncf %40 : vector<2x256xf32> to vector<2x256xbf16>
      %c0_38 = arith.constant 0 : index
      %c0_39 = arith.constant 0 : index
      %68 = vector.load %arg12[%c0_38, %c0_39] : memref<256x128xbf16, #tpu.memory_space<vmem>>, vector<256x128xbf16>
      %cst_40 = arith.constant dense<0.000000e+00> : vector<2x128xf32>
      %69 = tpu.matmul %67, %68, %cst_40 {dimension_numbers = #tpu.dot_dimension_numbers<[1], [0], [0], [1], [0, 0, 1, 1], [], []>} : vector<2x256xbf16>, vector<256x128xbf16>, vector<2x128xf32> -> vector<2x128xf32>
      %c0_41 = arith.constant 0 : index
      %c0_42 = arith.constant 0 : index
      %70 = vector.load %arg13[%c0_41, %c0_42] : memref<16x128xbf16, #tpu.memory_space<vmem>>, vector<16x128xbf16>
      %cst_43 = arith.constant dense<0.000000e+00> : vector<2x128xf32>
      %71 = tpu.matmul %66, %70, %cst_43 {dimension_numbers = #tpu.dot_dimension_numbers<[1], [0], [0], [1], [0, 0, 1, 1], [], []>} : vector<2x16xbf16>, vector<16x128xbf16>, vector<2x128xf32> -> vector<2x128xf32>
      %72 = arith.addf %69, %71 : vector<2x128xf32>
      %c0_44 = arith.constant 0 : index
      %c0_45 = arith.constant 0 : index
      %73 = vector.load %arg14[%c0_44, %c0_45] : memref<1x128xf32, #tpu.memory_space<vmem>>, vector<1x128xf32>
      %74 = vector.broadcast %73 : vector<1x128xf32> to vector<2x128xf32>
      %75 = arith.addf %72, %74 : vector<2x128xf32>
      %c0_46 = arith.constant 0 : index
      %c0_47 = arith.constant 0 : index
      %76 = vector.load %arg15[%c0_46, %c0_47] : memref<2x128xf32, #tpu.memory_space<vmem>>, vector<2x128xf32>
      tpu.vector_store %arg15[%c0_46, %c0_47], %75 {strides = array<i32>} : memref<2x128xf32, #tpu.memory_space<vmem>>, vector<2x128xf32>,
    } else {
    }
    return
  }
  func.func @transform_0(%arg0: i32, %arg1: i32) -> (i32, i32, i32) {
    %c0_i32 = arith.constant 0 : i32
    %c0_i32_0 = arith.constant 0 : i32
    return %arg0, %arg1, %c0_i32 : i32, i32, i32
  }
  func.func @transform_1(%arg0: i32, %arg1: i32) -> (i32, i32) {
    %c0_i32 = arith.constant 0 : i32
    %c0_i32_0 = arith.constant 0 : i32
    return %arg0, %c0_i32 : i32, i32
  }
  func.func @transform_2(%arg0: i32, %arg1: i32) -> (i32, i32) {
    %c0_i32 = arith.constant 0 : i32
    %c0_i32_0 = arith.constant 0 : i32
    %c0_i32_1 = arith.constant 0 : i32
    return %c0_i32, %c0_i32_0 : i32, i32
  }
  func.func @transform_3(%arg0: i32, %arg1: i32) -> (i32, i32) {
    %c0_i32 = arith.constant 0 : i32
    %c0_i32_0 = arith.constant 0 : i32
    %c0_i32_1 = arith.constant 0 : i32
    return %c0_i32, %c0_i32_0 : i32, i32
  }
  func.func @transform_4(%arg0: i32, %arg1: i32) -> (i32, i32) {
    %c0_i32 = arith.constant 0 : i32
    %c0_i32_0 = arith.constant 0 : i32
    %c0_i32_1 = arith.constant 0 : i32
    return %c0_i32, %c0_i32_0 : i32, i32
  }
  func.func @transform_5(%arg0: i32, %arg1: i32) -> (i32, i32) {
    %c0_i32 = arith.constant 0 : i32
    %c0_i32_0 = arith.constant 0 : i32
    %c0_i32_1 = arith.constant 0 : i32
    return %c0_i32, %c0_i32_0 : i32, i32
  }
  func.func @transform_6(%arg0: i32, %arg1: i32) -> (i32, i32) {
    %c0_i32 = arith.constant 0 : i32
    %c0_i32_0 = arith.constant 0 : i32
    %c0_i32_1 = arith.constant 0 : i32
    return %c0_i32, %c0_i32_0 : i32, i32
  }
  func.func @transform_7(%arg0: i32, %arg1: i32) -> (i32, i32) {
    %c0_i32 = arith.constant 0 : i32
    %c0_i32_0 = arith.constant 0 : i32
    %c0_i32_1 = arith.constant 0 : i32
    return %c0_i32, %c0_i32_0 : i32, i32
  }
  func.func @transform_8(%arg0: i32, %arg1: i32) -> (i32, i32) {
    %c0_i32 = arith.constant 0 : i32
    %c0_i32_0 = arith.constant 0 : i32
    %c0_i32_1 = arith.constant 0 : i32
    return %c0_i32, %c0_i32_0 : i32, i32
  }
  func.func @transform_9(%arg0: i32, %arg1: i32) -> (i32, i32) {
    %c0_i32 = arith.constant 0 : i32
    %c0_i32_0 = arith.constant 0 : i32
    %c0_i32_1 = arith.constant 0 : i32
    return %c0_i32, %c0_i32_0 : i32, i32
  }
  func.func @transform_10(%arg0: i32, %arg1: i32) -> (i32, i32) {
    %c0_i32 = arith.constant 0 : i32
    %c0_i32_0 = arith.constant 0 : i32
    %c0_i32_1 = arith.constant 0 : i32
    return %c0_i32, %c0_i32_0 : i32, i32
  }
  func.func @transform_11(%arg0: i32, %arg1: i32) -> (i32, i32) {
    %c0_i32 = arith.constant 0 : i32
    %c0_i32_0 = arith.constant 0 : i32
    %c0_i32_1 = arith.constant 0 : i32
    return %c0_i32, %c0_i32_0 : i32, i32
  }
  func.func @transform_12(%arg0: i32, %arg1: i32) -> (i32, i32) {
    %c0_i32 = arith.constant 0 : i32
    %c0_i32_0 = arith.constant 0 : i32
    %c0_i32_1 = arith.constant 0 : i32
    return %c0_i32, %c0_i32_0 : i32, i32
  }
  func.func @transform_13(%arg0: i32, %arg1: i32) -> (i32, i32) {
    %c0_i32 = arith.constant 0 : i32
    %c0_i32_0 = arith.constant 0 : i32
    return %arg0, %c0_i32 : i32, i32
  }
}

</mosaic_0001>

<llo_original>
// kernel: tpu_custom_call.1
$region0: #{tpu_custom_call.1}
  #allocation0 [shape = 'u32[]', space=smem, size = 0x4, offset = 0x4, fixed_abs, tag = 'smem constant byte address 0x4 - core index']
  #allocation1 [shape = 'u32[144,128]{1,0:T(1,128)}', space=vmem, size = 0x12000, scoped, tag = 'internal scratch']
  #allocation2 [shape = 'f32[2,256]{1,0:T(2,128)}', space=vmem, size = 0x800, scoped, tag = 'scratch operand']
  %s0 = inlined_call_operand.vmem [shape: bf16[2,64,27], index: 0, kind: input, shape index: {}]
  %s1 = inlined_call_operand.hbm [shape: f32[2,8], index: 1, kind: input, shape index: {}]
  %s2 = inlined_call_operand.vmem [shape: bf16[27,32], index: 2, kind: input, shape index: {}]
  %s3 = inlined_call_operand.hbm [shape: f32[1,32], index: 3, kind: input, shape index: {}]
  %s4 = inlined_call_operand.hbm [shape: bf16[32,256], index: 4, kind: input, shape index: {}]
  %s5 = inlined_call_operand.hbm [shape: f32[1,256], index: 5, kind: input, shape index: {}]
  %s6 = inlined_call_operand.hbm [shape: bf16[8,32], index: 6, kind: input, shape index: {}]
  %s7 = inlined_call_operand.hbm [shape: f32[1,32], index: 7, kind: input, shape index: {}]
  %s8 = inlined_call_operand.vmem [shape: bf16[32,16], index: 8, kind: input, shape index: {}]
  %s9 = inlined_call_operand.hbm [shape: f32[1,16], index: 9, kind: input, shape index: {}]
  %s10 = inlined_call_operand.vmem [shape: bf16[256,128], index: 10, kind: input, shape index: {}]
  %s11 = inlined_call_operand.vmem [shape: bf16[16,128], index: 11, kind: input, shape index: {}]
  %s12 = inlined_call_operand.vmem [shape: f32[1,128], index: 12, kind: input, shape index: {}]
  %s13 = inlined_call_operand.hbm [shape: f32[2,128], index: 13, kind: output, shape index: {}]
  %s14 = sld [smem:[#allocation0]]
  $region98: #{tpu_custom_call.1} parent=0
    _
  %s16 = ssub.s32 1, %s14
  %s17 = scalar_select 0, %s16, %s14
  $region1: #{tpu_custom_call.1} parent=0
    #allocation3 [shape = 'u8[1024]{0}', space=vmem, size = 0x400, scoped, tag = 'input window, operand 1, single buffered']
    #allocation4 [shape = 's32[1]{0}', space=sflag, size = 0x4, scoped, tag = 'scoped memory for tpu_custom_call.1']
    #allocation5 [shape = 's32[1]{0}', space=sflag, size = 0x4, scoped, tag = 'scoped memory for tpu_custom_call.1']
    #allocation6 [shape = 'u8[512]{0}', space=vmem, size = 0x400, scoped, tag = 'input window, operand 3, single buffered']
    #allocation7 [shape = 's32[1]{0}', space=sflag, size = 0x4, scoped, tag = 'scoped memory for tpu_custom_call.1']
    #allocation8 [shape = 'u8[16384]{0}', space=vmem, size = 0x4000, scoped, tag = 'input window, operand 4, single buffered']
    #allocation9 [shape = 'u8[1024]{0}', space=vmem, size = 0x400, scoped, tag = 'input window, operand 5, single buffered']
    #allocation10 [shape = 's32[1]{0}', space=sflag, size = 0x4, scoped, tag = 'scoped memory for tpu_custom_call.1']
    #allocation11 [shape = 'u8[2048]{0}', space=vmem, size = 0x800, scoped, tag = 'input window, operand 6, single buffered']
    #allocation12 [shape = 'u8[512]{0}', space=vmem, size = 0x400, scoped, tag = 'input window, operand 7, single buffered']
    #allocation13 [shape = 's32[1]{0}', space=sflag, size = 0x4, scoped, tag = 'scoped memory for tpu_custom_call.1']
    #allocation14 [shape = 'u8[512]{0}', space=vmem, size = 0x400, scoped, tag = 'input window, operand 9, single buffered']
    #allocation15 [shape = 'u8[1024]{0}', space=vmem, size = 0x400, scoped, tag = 'output window, operand 0, single buffered']
    %18 = vsyncpa [#allocation4], 0
    %19 = vsyncpa [#allocation7], 0
    %20 = vsyncpa [#allocation10], 0
    %21 = vsyncpa [#allocation13], 0
    %22 = vsyncpa [#allocation5], 0
    // Predicated region
    $region2: #{tpu_custom_call.1} parent=1 // pred_check
      _
    $region3: #{tpu_custom_call.1} parent=1 // pred_check_branch
      %24 = sbr.rel (0) target = $region5
    $region4: #{tpu_custom_call.1} parent=1 // pred_region
      _
    $region5: #{tpu_custom_call.1} parent=1 // pred_fallthru
      _
    // Predicated region
    $region6: #{tpu_custom_call.1} parent=1 // pred_check
      _
    $region7: #{tpu_custom_call.1} parent=1 // pred_check_branch
      %26 = sbr.rel (0) target = $region9
    $region8: #{tpu_custom_call.1} parent=1 // pred_region
      %s28 = ssub.s32 32, 32
      %29 = vsyncadd [#allocation4], %s28
      %s31 = sshll.u32 [#allocation3], 4
      %s32 = int_to_ptr.vmem [resolvable:$true] %s31
      %34 = dma.hbm_to_vmem [thread:$0]  %s1, 32, %s32, [#allocation4]
    $region9: #{tpu_custom_call.1} parent=1 // pred_fallthru
      _
    // Predicated region
    $region10: #{tpu_custom_call.1} parent=1 // pred_check
      _
    $region11: #{tpu_custom_call.1} parent=1 // pred_check_branch
      %36 = sbr.rel (0) target = $region13
    $region12: #{tpu_custom_call.1} parent=1 // pred_region
      _
    $region13: #{tpu_custom_call.1} parent=1 // pred_fallthru
      _
    // Predicated region
    $region14: #{tpu_custom_call.1} parent=1 // pred_check
      _
    $region15: #{tpu_custom_call.1} parent=1 // pred_check_branch
      %38 = sbr.rel (0) target = $region17
    $region16: #{tpu_custom_call.1} parent=1 // pred_region
      %s40 = ssub.s32 16, 16
      %41 = vsyncadd [#allocation7], %s40
      %s43 = sshll.u32 [#allocation6], 4
      %s44 = int_to_ptr.vmem [resolvable:$true] %s43
      %46 = dma.hbm_to_vmem [thread:$0]  %s3, 16, %s44, [#allocation7]
    $region17: #{tpu_custom_call.1} parent=1 // pred_fallthru
      _
    // Predicated region
    $region18: #{tpu_custom_call.1} parent=1 // pred_check
      _
    $region19: #{tpu_custom_call.1} parent=1 // pred_check_branch
      %48 = sbr.rel (0) target = $region21
    $region20: #{tpu_custom_call.1} parent=1 // pred_region
      %s50 = ssub.s32 512, 512
      %51 = vsyncadd [#allocation7], %s50
      %s52 = sshll.u32 [#allocation8], 4
      %s53 = int_to_ptr.vmem [resolvable:$true] %s52
      %58 = dma.hbm_to_vmem [thread:$0]  %s4, 512, %s53, [#allocation7], 128, 128, 8
    $region21: #{tpu_custom_call.1} parent=1 // pred_fallthru
      _
    // Predicated region
    $region22: #{tpu_custom_call.1} parent=1 // pred_check
      _
    $region23: #{tpu_custom_call.1} parent=1 // pred_check_branch
      %60 = sbr.rel (0) target = $region25
    $region24: #{tpu_custom_call.1} parent=1 // pred_region
      %s62 = ssub.s32 32, 32
      %63 = vsyncadd [#allocation10], %s62
      %s65 = sshll.u32 [#allocation9], 4
      %s66 = int_to_ptr.vmem [resolvable:$true] %s65
      %68 = dma.hbm_to_vmem [thread:$0]  %s5, 32, %s66, [#allocation10]
    $region25: #{tpu_custom_call.1} parent=1 // pred_fallthru
      _
    // Predicated region
    $region26: #{tpu_custom_call.1} parent=1 // pred_check
      _
    $region27: #{tpu_custom_call.1} parent=1 // pred_check_branch
      %70 = sbr.rel (0) target = $region29
    $region28: #{tpu_custom_call.1} parent=1 // pred_region
      %s72 = ssub.s32 64, 64
      %73 = vsyncadd [#allocation10], %s72
      %s75 = sshll.u32 [#allocation11], 4
      %s76 = int_to_ptr.vmem [resolvable:$true] %s75
      %78 = dma.hbm_to_vmem [thread:$0]  %s6, 64, %s76, [#allocation10]
    $region29: #{tpu_custom_call.1} parent=1 // pred_fallthru
      _
    // Predicated region
    $region30: #{tpu_custom_call.1} parent=1 // pred_check
      _
    $region31: #{tpu_custom_call.1} parent=1 // pred_check_branch
      %80 = sbr.rel (0) target = $region33
    $region32: #{tpu_custom_call.1} parent=1 // pred_region
      %s82 = ssub.s32 16, 16
      %83 = vsyncadd [#allocation13], %s82
      %s85 = sshll.u32 [#allocation12], 4
      %s86 = int_to_ptr.vmem [resolvable:$true] %s85
      %88 = dma.hbm_to_vmem [thread:$0]  %s7, 16, %s86, [#allocation13]
    $region33: #{tpu_custom_call.1} parent=1 // pred_fallthru
      _
    // Predicated region
    $region34: #{tpu_custom_call.1} parent=1 // pred_check
      _
    $region35: #{tpu_custom_call.1} parent=1 // pred_check_branch
      %90 = sbr.rel (0) target = $region37
    $region36: #{tpu_custom_call.1} parent=1 // pred_region
      _
    $region37: #{tpu_custom_call.1} parent=1 // pred_fallthru
      _
    // Predicated region
    $region38: #{tpu_custom_call.1} parent=1 // pred_check
      _
    $region39: #{tpu_custom_call.1} parent=1 // pred_check_branch
      %92 = sbr.rel (0) target = $region41
    $region40: #{tpu_custom_call.1} parent=1 // pred_region
      %s94 = ssub.s32 16, 16
      %95 = vsyncadd [#allocation13], %s94
      %s97 = sshll.u32 [#allocation14], 4
      %s98 = int_to_ptr.vmem [resolvable:$true] %s97
      %100 = dma.hbm_to_vmem [thread:$0]  %s9, 16, %s98, [#allocation13]
    $region41: #{tpu_custom_call.1} parent=1 // pred_fallthru
      _
    // Predicated region
    $region42: #{tpu_custom_call.1} parent=1 // pred_check
      _
    $region43: #{tpu_custom_call.1} parent=1 // pred_check_branch
      %102 = sbr.rel (0) target = $region45
    $region44: #{tpu_custom_call.1} parent=1 // pred_region
      _
    $region45: #{tpu_custom_call.1} parent=1 // pred_fallthru
      _
    // Predicated region
    $region46: #{tpu_custom_call.1} parent=1 // pred_check
      _
    $region47: #{tpu_custom_call.1} parent=1 // pred_check_branch
      %104 = sbr.rel (0) target = $region49
    $region48: #{tpu_custom_call.1} parent=1 // pred_region
      _
    $region49: #{tpu_custom_call.1} parent=1 // pred_fallthru
      _
    // Predicated region
    $region50: #{tpu_custom_call.1} parent=1 // pred_check
      _
    $region51: #{tpu_custom_call.1} parent=1 // pred_check_branch
      %106 = sbr.rel (0) target = $region53
    $region52: #{tpu_custom_call.1} parent=1 // pred_region
      _
    $region53: #{tpu_custom_call.1} parent=1 // pred_fallthru
      _
    // Predicated region
    $region54: #{tpu_custom_call.1} parent=1 // pred_check
      _
    $region55: #{tpu_custom_call.1} parent=1 // pred_check_branch
      %108 = sbr.rel (0) target = $region57
    $region56: #{tpu_custom_call.1} parent=1 // pred_region
      %109 = dma.done [#allocation4], 32
    $region57: #{tpu_custom_call.1} parent=1 // pred_fallthru
      _
    // Predicated region
    $region58: #{tpu_custom_call.1} parent=1 // pred_check
      _
    $region59: #{tpu_custom_call.1} parent=1 // pred_check_branch
      %111 = sbr.rel (0) target = $region61
    $region60: #{tpu_custom_call.1} parent=1 // pred_region
      %112 = dma.done [#allocation7], 16
    $region61: #{tpu_custom_call.1} parent=1 // pred_fallthru
      _
    // Predicated region
    $region62: #{tpu_custom_call.1} parent=1 // pred_check
      _
    $region63: #{tpu_custom_call.1} parent=1 // pred_check_branch
      %114 = sbr.rel (0) target = $region65
    $region64: #{tpu_custom_call.1} parent=1 // pred_region
      %115 = dma.done [#allocation7], 512
    $region65: #{tpu_custom_call.1} parent=1 // pred_fallthru
      _
    // Predicated region
    $region66: #{tpu_custom_call.1} parent=1 // pred_check
      _
    $region67: #{tpu_custom_call.1} parent=1 // pred_check_branch
      %117 = sbr.rel (0) target = $region69
    $region68: #{tpu_custom_call.1} parent=1 // pred_region
      %118 = dma.done [#allocation10], 32
    $region69: #{tpu_custom_call.1} parent=1 // pred_fallthru
      _
    // Predicated region
    $region70: #{tpu_custom_call.1} parent=1 // pred_check
      _
    $region71: #{tpu_custom_call.1} parent=1 // pred_check_branch
      %120 = sbr.rel (0) target = $region73
    $region72: #{tpu_custom_call.1} parent=1 // pred_region
      %121 = dma.done [#allocation10], 64
    $region73: #{tpu_custom_call.1} parent=1 // pred_fallthru
      _
    // Predicated region
    $region74: #{tpu_custom_call.1} parent=1 // pred_check
      _
    $region75: #{tpu_custom_call.1} parent=1 // pred_check_branch
      %123 = sbr.rel (0) target = $region77
    $region76: #{tpu_custom_call.1} parent=1 // pred_region
      %124 = dma.done [#allocation13], 16
    $region77: #{tpu_custom_call.1} parent=1 // pred_fallthru
      _
    // Predicated region
    $region78: #{tpu_custom_call.1} parent=1 // pred_check
      _
    $region79: #{tpu_custom_call.1} parent=1 // pred_check_branch
      %126 = sbr.rel (0) target = $region81
    $region80: #{tpu_custom_call.1} parent=1 // pred_region
      %127 = dma.done [#allocation13], 16
    $region81: #{tpu_custom_call.1} parent=1 // pred_fallthru
      _
    %p130 = scmp.eq.s32.totalorder 0, 0
    // Predicated region
    $region82: #{tpu_custom_call.1} parent=1 // pred_check
      %p131 = pneg %p130
    $region83: #{tpu_custom_call.1} parent=1 // pred_check_branch
      %133 = sbr.rel (%p131) target = $region85
    $region84: #{tpu_custom_call.1} parent=1 // pred_region
      %134 = vst [vmem:[#allocation2] sm:$0xf] 0.0
    $region85: #{tpu_custom_call.1} parent=1 // pred_fallthru
      _
    %v135 = vld [vmem:[%s0] sm:$0xf]
    %v136 = vld [vmem:[%s0 + $0x4] sm:$0xf]
    %v137 = vld [vmem:[%s0 + $0x8] sm:$0xf]
    %v138 = vld [vmem:[%s0 + $0xc] sm:$0xf]
    %v139 = vld [vmem:[%s0 + $0x10] sm:$0xf]
    %v140 = vld [vmem:[%s0 + $0x14] sm:$0xf]
    %v141 = vld [vmem:[%s0 + $0x18] sm:$0xf]
    %v142 = vld [vmem:[%s0 + $0x1c] sm:$0xf]
    %v143 = vld [vmem:[%s0 + $0x20] sm:$0xf]
    %v144 = vld [vmem:[%s0 + $0x24] sm:$0xf]
    %v145 = vld [vmem:[%s0 + $0x28] sm:$0xf]
    %v146 = vld [vmem:[%s0 + $0x2c] sm:$0xf]
    %v147 = vld [vmem:[%s0 + $0x30] sm:$0xf]
    %v148 = vld [vmem:[%s0 + $0x34] sm:$0xf]
    %v149 = vld [vmem:[%s0 + $0x38] sm:$0xf]
    %v150 = vld [vmem:[%s0 + $0x3c] sm:$0xf]
    %v151 = vld [vmem:[%s2] sm:$0xf]
    %v152 = vld [vmem:[%s2 + $0x4] sm:$0xf]
    %v153 = vld [vmem:[%s2 + $0x8] sm:$0xf]
    %v154 = vld [vmem:[%s2 + $0xc] sm:$0x3]
    %v155 = vld [vmem:[#allocation6] sm:$0x1]
    %v157 = vlaneseq
    %v158 = vshrl.u32 %v157, 7
    %v159 = vsub.s32 0, %v158
    %v160 = vrot.slane %v155, %v159
    %v178 = vunpack.c.l.b16 %v135
    %v179 = vunpack.c.l.b16 %v136
    %v180 = vunpack.c.l.b16 %v137
    %v181 = vunpack.c.l.b16 %v138
    %v182 = vunpack.c.l.b16 %v139
    %v183 = vunpack.c.l.b16 %v140
    %v184 = vunpack.c.l.b16 %v141
    %v185 = vunpack.c.l.b16 %v142
    %v186 = vunpack.c.l.b16 %v143
    %v187 = vunpack.c.l.b16 %v144
    %v188 = vunpack.c.l.b16 %v145
    %v189 = vunpack.c.l.b16 %v146
    %v190 = vunpack.c.l.b16 %v147
    %v191 = vunpack.c.l.b16 %v148
    %v192 = vunpack.c.l.b16 %v149
    %v193 = vunpack.c.l.b16 %v150
    %v194 = vpack.c.b16 %v179, %v178
    %v195 = vpack.c.b16 %v181, %v180
    %v196 = vpack.c.b16 %v183, %v182
    %v197 = vpack.c.b16 %v185, %v184
    %v198 = vpack.c.b16 %v187, %v186
    %v199 = vpack.c.b16 %v189, %v188
    %v200 = vpack.c.b16 %v191, %v190
    %v201 = vpack.c.b16 %v193, %v192
    %v206 = vunpack.c.l.b16 %v151
    %v207 = vunpack.c.l.b16 %v152
    %v208 = vunpack.c.l.b16 %v153
    %v209 = vunpack.c.l.b16 %v154
    %v210 = vpack.c.b16 %v207, %v206
    %v211 = vpack.c.b16 %v209, %v208
    %vm213 = vcmask 220160
    %v215 = vsel %vm213, %v194, 0
    %v218 = vsel %vm213, %v195, 0
    %v221 = vsel %vm213, %v196, 0
    %v224 = vsel %vm213, %v197, 0
    %v227 = vsel %vm213, %v198, 0
    %v230 = vsel %vm213, %v199, 0
    %v233 = vsel %vm213, %v200, 0
    %v236 = vsel %vm213, %v201, 0
    %vm238 = vcmask 1044480
    %vm239 = vcmask 1045504
    %v240 = vsel %vm238, 4294967295, 65535
    %v241 = vsel %vm239, %v240, 0
    %v243 = vand.u32 %v211, %v241
    %245 = vmatprep.subr.bf16.mxu0 0
    %246 = vmatpush1.bf16.msra.mxu0 %v210
    %247 = vmatprep.subr.bf16.mxu0 0
    %248 = vmatpush1.bf16.msra.mxu0 %v243
    %249 = vmatprep.subr.bf16.mxu0 0
    %250 = vmatpush1.bf16.msra.mxu0 0
    %251 = vmatprep.subr.bf16.mxu0 0
    %252 = vmatpush1.bf16.msra.mxu0 0
    %253 = vmatprep.subr.bf16.mxu0 0
    %254 = vmatpush1.bf16.msra.mxu0 0
    %255 = vmatprep.subr.bf16.mxu0 0
    %256 = vmatpush1.bf16.msra.mxu0 0
    %257 = vmatprep.subr.bf16.mxu0 0
    %258 = vmatpush1.bf16.msra.mxu0 0
    %259 = vmatprep.subr.bf16.mxu0 0
    %260 = vmatpush1.bf16.msra.mxu0 0
    %261 = vmatprep.subr.bf16.mxu0 0
    %262 = vmatpush1.bf16.msra.mxu0 0
    %263 = vmatprep.subr.bf16.mxu0 0
    %264 = vmatpush1.bf16.msra.mxu0 0
    %265 = vmatprep.subr.bf16.mxu0 0
    %266 = vmatpush1.bf16.msra.mxu0 0
    %267 = vmatprep.subr.bf16.mxu0 0
    %268 = vmatpush1.bf16.msra.mxu0 0
    %269 = vmatprep.subr.bf16.mxu0 0
    %270 = vmatpush1.bf16.msra.mxu0 0
    %271 = vmatprep.subr.bf16.mxu0 0
    %272 = vmatpush1.bf16.msra.mxu0 0
    %273 = vmatprep.subr.bf16.mxu0 0
    %274 = vmatpush1.bf16.msra.mxu0 0
    %275 = vmatprep.subr.bf16.mxu0 0
    %276 = vmatpush1.bf16.msra.mxu0 0
    %277 = vmatprep.mubr.bf16.mxu0 0
    %278 = vmatmul.mubr.bf16.gmra.mrb[0].mxu0 %v215
    %v279 = vpop.f32.mrb[0].mxu0
    %v280 = vadd.f32 %v160, %v279
    %v281 = vpop.f32.mrb[0].mxu0
    %v282 = vpop.f32.mrb[0].mxu0
    %v283 = vadd.f32 %v160, %v282
    %v284 = vpop.f32.mrb[0].mxu0
    %285 = vmatprep.mubr.bf16.mxu0 0
    %286 = vmatmul.mubr.bf16.gmra.mrb[0].mxu0 %v218
    %v287 = vpop.f32.mrb[0].mxu0
    %v288 = vadd.f32 %v160, %v287
    %v289 = vpop.f32.mrb[0].mxu0
    %v290 = vpop.f32.mrb[0].mxu0
    %v291 = vadd.f32 %v160, %v290
    %v292 = vpop.f32.mrb[0].mxu0
    %293 = vmatprep.mubr.bf16.mxu0 0
    %294 = vmatmul.mubr.bf16.gmra.mrb[0].mxu0 %v221
    %v295 = vpop.f32.mrb[0].mxu0
    %v296 = vadd.f32 %v160, %v295
    %v297 = vpop.f32.mrb[0].mxu0
    %v298 = vpop.f32.mrb[0].mxu0
    %v299 = vadd.f32 %v160, %v298
    %v300 = vpop.f32.mrb[0].mxu0
    %301 = vmatprep.mubr.bf16.mxu0 0
    %302 = vmatmul.mubr.bf16.gmra.mrb[0].mxu0 %v224
    %v303 = vpop.f32.mrb[0].mxu0
    %v304 = vadd.f32 %v160, %v303
    %v305 = vpop.f32.mrb[0].mxu0
    %v306 = vpop.f32.mrb[0].mxu0
    %v307 = vadd.f32 %v160, %v306
    %v308 = vpop.f32.mrb[0].mxu0
    %309 = vmatprep.mubr.bf16.mxu0 0
    %310 = vmatmul.mubr.bf16.gmra.mrb[0].mxu0 %v227
    %v311 = vpop.f32.mrb[0].mxu0
    %v312 = vadd.f32 %v160, %v311
    %v313 = vpop.f32.mrb[0].mxu0
    %v314 = vpop.f32.mrb[0].mxu0
    %v315 = vadd.f32 %v160, %v314
    %v316 = vpop.f32.mrb[0].mxu0
    %317 = vmatprep.mubr.bf16.mxu0 0
    %318 = vmatmul.mubr.bf16.gmra.mrb[0].mxu0 %v230
    %v319 = vpop.f32.mrb[0].mxu0
    %v320 = vadd.f32 %v160, %v319
    %v321 = vpop.f32.mrb[0].mxu0
    %v322 = vpop.f32.mrb[0].mxu0
    %v323 = vadd.f32 %v160, %v322
    %v324 = vpop.f32.mrb[0].mxu0
    %325 = vmatprep.mubr.bf16.mxu0 0
    %326 = vmatmul.mubr.bf16.gmra.mrb[0].mxu0 %v233
    %v327 = vpop.f32.mrb[0].mxu0
    %v328 = vadd.f32 %v160, %v327
    %v329 = vpop.f32.mrb[0].mxu0
    %v330 = vpop.f32.mrb[0].mxu0
    %v331 = vadd.f32 %v160, %v330
    %v332 = vpop.f32.mrb[0].mxu0
    %333 = vmatprep.mubr.bf16.mxu0 0
    %334 = vmatmul.mubr.bf16.gmra.mrb[0].mxu0 %v236
    %v335 = vpop.f32.mrb[0].mxu0
    %v336 = vadd.f32 %v160, %v335
    %v337 = vpop.f32.mrb[0].mxu0
    %v338 = vpop.f32.mrb[0].mxu0
    %v339 = vadd.f32 %v160, %v338
    %v340 = vpop.f32.mrb[0].mxu0
    %341 = vdwg.mxu0
    %v342 = vpack.c.bf16 %v283, %v280
    %v343 = vpack.c.bf16 %v291, %v288
    %v344 = vpack.c.bf16 %v299, %v296
    %v345 = vpack.c.bf16 %v307, %v304
    %v346 = vpack.c.bf16 %v315, %v312
    %v347 = vpack.c.bf16 %v323, %v320
    %v348 = vpack.c.bf16 %v331, %v328
    %v349 = vpack.c.bf16 %v339, %v336
    %v350 = vxor.u32 %v342, 2147516416
    %v351 = vxor.u32 %v343, 2147516416
    %v352 = vxor.u32 %v344, 2147516416
    %v353 = vxor.u32 %v345, 2147516416
    %v354 = vxor.u32 %v346, 2147516416
    %v355 = vxor.u32 %v347, 2147516416
    %v356 = vxor.u32 %v348, 2147516416
    %v357 = vxor.u32 %v349, 2147516416
    %v359 = vmul.bf16 %v350, 1069105081
    %v360 = vpow.bf16.pop %v359
    %v362 = vmul.bf16 %v351, 1069105081
    %v363 = vpow.bf16.pop %v362
    %v365 = vmul.bf16 %v352, 1069105081
    %v366 = vpow.bf16.pop %v365
    %v368 = vmul.bf16 %v353, 1069105081
    %v369 = vpow.bf16.pop %v368
    %v371 = vmul.bf16 %v354, 1069105081
    %v372 = vpow.bf16.pop %v371
    %v374 = vmul.bf16 %v355, 1069105081
    %v375 = vpow.bf16.pop %v374
    %v377 = vmul.bf16 %v356, 1069105081
    %v378 = vpow.bf16.pop %v377
    %v380 = vmul.bf16 %v357, 1069105081
    %v381 = vpow.bf16.pop %v380
    %v382 = vadd.bf16 %v360, 1065369472
    %v383 = vadd.bf16 %v363, 1065369472
    %v384 = vadd.bf16 %v366, 1065369472
    %v385 = vadd.bf16 %v369, 1065369472
    %v386 = vadd.bf16 %v372, 1065369472
    %v387 = vadd.bf16 %v375, 1065369472
    %v388 = vadd.bf16 %v378, 1065369472
    %v389 = vadd.bf16 %v381, 1065369472
    %v390 = vrcp.bf16.pop %v382
    %v391 = vmul.bf16 1065369472, %v390
    %v392 = vrcp.bf16.pop %v383
    %v393 = vmul.bf16 1065369472, %v392
    %v394 = vrcp.bf16.pop %v384
    %v395 = vmul.bf16 1065369472, %v394
    %v396 = vrcp.bf16.pop %v385
    %v397 = vmul.bf16 1065369472, %v396
    %v398 = vrcp.bf16.pop %v386
    %v399 = vmul.bf16 1065369472, %v398
    %v400 = vrcp.bf16.pop %v387
    %v401 = vmul.bf16 1065369472, %v400
    %v402 = vrcp.bf16.pop %v388
    %v403 = vmul.bf16 1065369472, %v402
    %v404 = vrcp.bf16.pop %v389
    %v405 = vmul.bf16 1065369472, %v404
    %v406 = vmul.bf16 %v342, %v391
    %v407 = vmul.bf16 %v343, %v393
    %v408 = vmul.bf16 %v344, %v395
    %v409 = vmul.bf16 %v345, %v397
    %v410 = vmul.bf16 %v346, %v399
    %v411 = vmul.bf16 %v347, %v401
    %v412 = vmul.bf16 %v348, %v403
    %v413 = vmul.bf16 %v349, %v405
    %v414 = vld [vmem:[#allocation8] sm:$0xff]
    %v415 = vld [vmem:[#allocation8 + $0x8] sm:$0xff]
    %v416 = vld [vmem:[#allocation8 + $0x10] sm:$0xff]
    %v417 = vld [vmem:[#allocation8 + $0x18] sm:$0xff]
    %v418 = vld [vmem:[#allocation9] sm:$0x3]
    %v420 = vlaneseq
    %v421 = vshrl.u32 %v420, 7
    %v422 = vsub.s32 0, %v421
    %v423 = vrot.slane %v418, %v422
    %v424 = vlaneseq
    %v425 = vshrl.u32 %v424, 7
    %v426 = vsub.s32 1, %v425
    %v427 = vrot.slane %v418, %v426
    %v434 = vunpack.c.l.b16 %v414
    %v435 = vunpack.c.h.b16 %v414
    %v436 = vunpack.c.l.b16 %v415
    %v437 = vunpack.c.h.b16 %v415
    %v438 = vunpack.c.l.b16 %v416
    %v439 = vunpack.c.h.b16 %v416
    %v440 = vunpack.c.l.b16 %v417
    %v441 = vunpack.c.h.b16 %v417
    %v442 = vpack.c.b16 %v436, %v434
    %v443 = vpack.c.b16 %v437, %v435
    %v444 = vpack.c.b16 %v440, %v438
    %v445 = vpack.c.b16 %v441, %v439
    %vm450 = vcmask 261120
    %v452 = vsel %vm450, %v406, 0
    %v455 = vsel %vm450, %v407, 0
    %v458 = vsel %vm450, %v408, 0
    %v461 = vsel %vm450, %v409, 0
    %v464 = vsel %vm450, %v410, 0
    %v467 = vsel %vm450, %v411, 0
    %v470 = vsel %vm450, %v412, 0
    %v473 = vsel %vm450, %v413, 0
    %475 = vmatprep.subr.bf16.mxu0 %v443
    %476 = vmatpush1.bf16.msra.mxu0 %v442
    %477 = vmatprep.subr.bf16.mxu0 %v445
    %478 = vmatpush1.bf16.msra.mxu0 %v444
    %479 = vmatprep.subr.bf16.mxu0 0
    %480 = vmatpush1.bf16.msra.mxu0 0
    %481 = vmatprep.subr.bf16.mxu0 0
    %482 = vmatpush1.bf16.msra.mxu0 0
    %483 = vmatprep.subr.bf16.mxu0 0
    %484 = vmatpush1.bf16.msra.mxu0 0
    %485 = vmatprep.subr.bf16.mxu0 0
    %486 = vmatpush1.bf16.msra.mxu0 0
    %487 = vmatprep.subr.bf16.mxu0 0
    %488 = vmatpush1.bf16.msra.mxu0 0
    %489 = vmatprep.subr.bf16.mxu0 0
    %490 = vmatpush1.bf16.msra.mxu0 0
    %491 = vmatprep.subr.bf16.mxu0 0
    %492 = vmatpush1.bf16.msra.mxu0 0
    %493 = vmatprep.subr.bf16.mxu0 0
    %494 = vmatpush1.bf16.msra.mxu0 0
    %495 = vmatprep.subr.bf16.mxu0 0
    %496 = vmatpush1.bf16.msra.mxu0 0
    %497 = vmatprep.subr.bf16.mxu0 0
    %498 = vmatpush1.bf16.msra.mxu0 0
    %499 = vmatprep.subr.bf16.mxu0 0
    %500 = vmatpush1.bf16.msra.mxu0 0
    %501 = vmatprep.subr.bf16.mxu0 0
    %502 = vmatpush1.bf16.msra.mxu0 0
    %503 = vmatprep.subr.bf16.mxu0 0
    %504 = vmatpush1.bf16.msra.mxu0 0
    %505 = vmatprep.subr.bf16.mxu0 0
    %506 = vmatpush1.bf16.msra.mxu0 0
    %507 = vmatprep.mubr.bf16.mxu0 0
    %508 = vmatmul.mubr.bf16.gmra.mrb[0].mxu0 %v452
    %v509 = vpop.f32.mrb[0].mxu0
    %v510 = vadd.f32 %v423, %v509
    %v511 = vpop.f32.mrb[0].mxu0
    %v512 = vadd.f32 %v427, %v511
    %v513 = vpop.f32.mrb[0].mxu0
    %v514 = vadd.f32 %v423, %v513
    %v515 = vpop.f32.mrb[0].mxu0
    %v516 = vadd.f32 %v427, %v515
    %517 = vmatprep.mubr.bf16.mxu0 0
    %518 = vmatmul.mubr.bf16.gmra.mrb[0].mxu0 %v455
    %v519 = vpop.f32.mrb[0].mxu0
    %v520 = vadd.f32 %v423, %v519
    %v521 = vpop.f32.mrb[0].mxu0
    %v522 = vadd.f32 %v427, %v521
    %v523 = vpop.f32.mrb[0].mxu0
    %v524 = vadd.f32 %v423, %v523
    %v525 = vpop.f32.mrb[0].mxu0
    %v526 = vadd.f32 %v427, %v525
    %527 = vmatprep.mubr.bf16.mxu0 0
    %528 = vmatmul.mubr.bf16.gmra.mrb[0].mxu0 %v458
    %v529 = vpop.f32.mrb[0].mxu0
    %v530 = vadd.f32 %v423, %v529
    %v531 = vpop.f32.mrb[0].mxu0
    %v532 = vadd.f32 %v427, %v531
    %v533 = vpop.f32.mrb[0].mxu0
    %v534 = vadd.f32 %v423, %v533
    %v535 = vpop.f32.mrb[0].mxu0
    %v536 = vadd.f32 %v427, %v535
    %537 = vmatprep.mubr.bf16.mxu0 0
    %538 = vmatmul.mubr.bf16.gmra.mrb[0].mxu0 %v461
    %v539 = vpop.f32.mrb[0].mxu0
    %v540 = vadd.f32 %v423, %v539
    %v541 = vpop.f32.mrb[0].mxu0
    %v542 = vadd.f32 %v427, %v541
    %v543 = vpop.f32.mrb[0].mxu0
    %v544 = vadd.f32 %v423, %v543
    %v545 = vpop.f32.mrb[0].mxu0
    %v546 = vadd.f32 %v427, %v545
    %547 = vmatprep.mubr.bf16.mxu0 0
    %548 = vmatmul.mubr.bf16.gmra.mrb[0].mxu0 %v464
    %v549 = vpop.f32.mrb[0].mxu0
    %v550 = vadd.f32 %v423, %v549
    %v551 = vpop.f32.mrb[0].mxu0
    %v552 = vadd.f32 %v427, %v551
    %v553 = vpop.f32.mrb[0].mxu0
    %v554 = vadd.f32 %v423, %v553
    %v555 = vpop.f32.mrb[0].mxu0
    %v556 = vadd.f32 %v427, %v555
    %557 = vmatprep.mubr.bf16.mxu0 0
    %558 = vmatmul.mubr.bf16.gmra.mrb[0].mxu0 %v467
    %v559 = vpop.f32.mrb[0].mxu0
    %v560 = vadd.f32 %v423, %v559
    %v561 = vpop.f32.mrb[0].mxu0
    %v562 = vadd.f32 %v427, %v561
    %v563 = vpop.f32.mrb[0].mxu0
    %v564 = vadd.f32 %v423, %v563
    %v565 = vpop.f32.mrb[0].mxu0
    %v566 = vadd.f32 %v427, %v565
    %567 = vmatprep.mubr.bf16.mxu0 0
    %568 = vmatmul.mubr.bf16.gmra.mrb[0].mxu0 %v470
    %v569 = vpop.f32.mrb[0].mxu0
    %v570 = vadd.f32 %v423, %v569
    %v571 = vpop.f32.mrb[0].mxu0
    %v572 = vadd.f32 %v427, %v571
    %v573 = vpop.f32.mrb[0].mxu0
    %v574 = vadd.f32 %v423, %v573
    %v575 = vpop.f32.mrb[0].mxu0
    %v576 = vadd.f32 %v427, %v575
    %577 = vmatprep.mubr.bf16.mxu0 0
    %578 = vmatmul.mubr.bf16.gmra.mrb[0].mxu0 %v473
    %v579 = vpop.f32.mrb[0].mxu0
    %v580 = vadd.f32 %v423, %v579
    %v581 = vpop.f32.mrb[0].mxu0
    %v582 = vadd.f32 %v427, %v581
    %v583 = vpop.f32.mrb[0].mxu0
    %v584 = vadd.f32 %v423, %v583
    %v585 = vpop.f32.mrb[0].mxu0
    %v586 = vadd.f32 %v427, %v585
    %587 = vdwg.mxu0
    %v588 = vpack.c.bf16 %v514, %v510
    %v589 = vpack.c.bf16 %v516, %v512
    %v590 = vpack.c.bf16 %v524, %v520
    %v591 = vpack.c.bf16 %v526, %v522
    %v592 = vpack.c.bf16 %v534, %v530
    %v593 = vpack.c.bf16 %v536, %v532
    %v594 = vpack.c.bf16 %v544, %v540
    %v595 = vpack.c.bf16 %v546, %v542
    %v596 = vpack.c.bf16 %v554, %v550
    %v597 = vpack.c.bf16 %v556, %v552
    %v598 = vpack.c.bf16 %v564, %v560
    %v599 = vpack.c.bf16 %v566, %v562
    %v600 = vpack.c.bf16 %v574, %v570
    %v601 = vpack.c.bf16 %v576, %v572
    %v602 = vpack.c.bf16 %v584, %v580
    %v603 = vpack.c.bf16 %v586, %v582
    %v604 = vxor.u32 %v588, 2147516416
    %v605 = vxor.u32 %v589, 2147516416
    %v606 = vxor.u32 %v590, 2147516416
    %v607 = vxor.u32 %v591, 2147516416
    %v608 = vxor.u32 %v592, 2147516416
    %v609 = vxor.u32 %v593, 2147516416
    %v610 = vxor.u32 %v594, 2147516416
    %v611 = vxor.u32 %v595, 2147516416
    %v612 = vxor.u32 %v596, 2147516416
    %v613 = vxor.u32 %v597, 2147516416
    %v614 = vxor.u32 %v598, 2147516416
    %v615 = vxor.u32 %v599, 2147516416
    %v616 = vxor.u32 %v600, 2147516416
    %v617 = vxor.u32 %v601, 2147516416
    %v618 = vxor.u32 %v602, 2147516416
    %v619 = vxor.u32 %v603, 2147516416
    %v621 = vmul.bf16 %v604, 1069105081
    %v622 = vpow.bf16.pop %v621
    %v624 = vmul.bf16 %v605, 1069105081
    %v625 = vpow.bf16.pop %v624
    %v627 = vmul.bf16 %v606, 1069105081
    %v628 = vpow.bf16.pop %v627
    %v630 = vmul.bf16 %v607, 1069105081
    %v631 = vpow.bf16.pop %v630
    %v633 = vmul.bf16 %v608, 1069105081
    %v634 = vpow.bf16.pop %v633
    %v636 = vmul.bf16 %v609, 1069105081
    %v637 = vpow.bf16.pop %v636
    %v639 = vmul.bf16 %v610, 1069105081
    %v640 = vpow.bf16.pop %v639
    %v642 = vmul.bf16 %v611, 1069105081
    %v643 = vpow.bf16.pop %v642
    %v645 = vmul.bf16 %v612, 1069105081
    %v646 = vpow.bf16.pop %v645
    %v648 = vmul.bf16 %v613, 1069105081
    %v649 = vpow.bf16.pop %v648
    %v651 = vmul.bf16 %v614, 1069105081
    %v652 = vpow.bf16.pop %v651
    %v654 = vmul.bf16 %v615, 1069105081
    %v655 = vpow.bf16.pop %v654
    %v657 = vmul.bf16 %v616, 1069105081
    %v658 = vpow.bf16.pop %v657
    %v660 = vmul.bf16 %v617, 1069105081
    %v661 = vpow.bf16.pop %v660
    %v663 = vmul.bf16 %v618, 1069105081
    %v664 = vpow.bf16.pop %v663
    %v666 = vmul.bf16 %v619, 1069105081
    %v667 = vpow.bf16.pop %v666
    %v668 = vadd.bf16 %v622, 1065369472
    %v669 = vadd.bf16 %v625, 1065369472
    %v670 = vadd.bf16 %v628, 1065369472
    %v671 = vadd.bf16 %v631, 1065369472
    %v672 = vadd.bf16 %v634, 1065369472
    %v673 = vadd.bf16 %v637, 1065369472
    %v674 = vadd.bf16 %v640, 1065369472
    %v675 = vadd.bf16 %v643, 1065369472
    %v676 = vadd.bf16 %v646, 1065369472
    %v677 = vadd.bf16 %v649, 1065369472
    %v678 = vadd.bf16 %v652, 1065369472
    %v679 = vadd.bf16 %v655, 1065369472
    %v680 = vadd.bf16 %v658, 1065369472
    %v681 = vadd.bf16 %v661, 1065369472
    %v682 = vadd.bf16 %v664, 1065369472
    %v683 = vadd.bf16 %v667, 1065369472
    %v684 = vrcp.bf16.pop %v668
    %v685 = vmul.bf16 1065369472, %v684
    %v686 = vrcp.bf16.pop %v669
    %v687 = vmul.bf16 1065369472, %v686
    %v688 = vrcp.bf16.pop %v670
    %v689 = vmul.bf16 1065369472, %v688
    %v690 = vrcp.bf16.pop %v671
    %v691 = vmul.bf16 1065369472, %v690
    %v692 = vrcp.bf16.pop %v672
    %v693 = vmul.bf16 1065369472, %v692
    %v694 = vrcp.bf16.pop %v673
    %v695 = vmul.bf16 1065369472, %v694
    %v696 = vrcp.bf16.pop %v674
    %v697 = vmul.bf16 1065369472, %v696
    %v698 = vrcp.bf16.pop %v675
    %v699 = vmul.bf16 1065369472, %v698
    %v700 = vrcp.bf16.pop %v676
    %v701 = vmul.bf16 1065369472, %v700
    %v702 = vrcp.bf16.pop %v677
    %v703 = vmul.bf16 1065369472, %v702
    %v704 = vrcp.bf16.pop %v678
    %v705 = vmul.bf16 1065369472, %v704
    %v706 = vrcp.bf16.pop %v679
    %v707 = vmul.bf16 1065369472, %v706
    %v708 = vrcp.bf16.pop %v680
    %v709 = vmul.bf16 1065369472, %v708
    %v710 = vrcp.bf16.pop %v681
    %v711 = vmul.bf16 1065369472, %v710
    %v712 = vrcp.bf16.pop %v682
    %v713 = vmul.bf16 1065369472, %v712
    %v714 = vrcp.bf16.pop %v683
    %v715 = vmul.bf16 1065369472, %v714
    %v716 = vmul.bf16 %v588, %v685
    %v717 = vmul.bf16 %v589, %v687
    %v718 = vmul.bf16 %v590, %v689
    %v719 = vmul.bf16 %v591, %v691
    %v720 = vmul.bf16 %v592, %v693
    %v721 = vmul.bf16 %v593, %v695
    %v722 = vmul.bf16 %v594, %v697
    %v723 = vmul.bf16 %v595, %v699
    %v724 = vmul.bf16 %v596, %v701
    %v725 = vmul.bf16 %v597, %v703
    %v726 = vmul.bf16 %v598, %v705
    %v727 = vmul.bf16 %v599, %v707
    %v728 = vmul.bf16 %v600, %v709
    %v729 = vmul.bf16 %v601, %v711
    %v730 = vmul.bf16 %v602, %v713
    %v731 = vmul.bf16 %v603, %v715
    %v732 = vld [vmem:[#allocation2] sm:$0xf]
    %v733 = vunpack.c.l.bf16 %v716
    %v734 = vunpack.c.l.bf16 %v717
    %v735 = vunpack.c.h.bf16 %v716
    %v736 = vunpack.c.h.bf16 %v717
    %v737 = vunpack.c.l.bf16 %v718
    %v738 = vunpack.c.l.bf16 %v719
    %v739 = vunpack.c.h.bf16 %v718
    %v740 = vunpack.c.h.bf16 %v719
    %v741 = vunpack.c.l.bf16 %v720
    %v742 = vunpack.c.l.bf16 %v721
    %v743 = vunpack.c.h.bf16 %v720
    %v744 = vunpack.c.h.bf16 %v721
    %v745 = vunpack.c.l.bf16 %v722
    %v746 = vunpack.c.l.bf16 %v723
    %v747 = vunpack.c.h.bf16 %v722
    %v748 = vunpack.c.h.bf16 %v723
    %v749 = vunpack.c.l.bf16 %v724
    %v750 = vunpack.c.l.bf16 %v725
    %v751 = vunpack.c.h.bf16 %v724
    %v752 = vunpack.c.h.bf16 %v725
    %v753 = vunpack.c.l.bf16 %v726
    %v754 = vunpack.c.l.bf16 %v727
    %v755 = vunpack.c.h.bf16 %v726
    %v756 = vunpack.c.h.bf16 %v727
    %v757 = vunpack.c.l.bf16 %v728
    %v758 = vunpack.c.l.bf16 %v729
    %v759 = vunpack.c.h.bf16 %v728
    %v760 = vunpack.c.h.bf16 %v729
    %v761 = vunpack.c.l.bf16 %v730
    %v762 = vunpack.c.l.bf16 %v731
    %v763 = vunpack.c.h.bf16 %v730
    %v764 = vunpack.c.h.bf16 %v731
    %v765 = vadd.f32 %v733, %v735
    %v766 = vadd.f32 %v765, %v737
    %v767 = vadd.f32 %v766, %v739
    %v768 = vadd.f32 %v767, %v741
    %v769 = vadd.f32 %v768, %v743
    %v770 = vadd.f32 %v769, %v745
    %v771 = vadd.f32 %v770, %v747
    %v772 = vrot.slane %v771, 4
    %v773 = vadd.f32 %v771, %v772
    %v774 = vrot.slane %v773, 2
    %v775 = vadd.f32 %v773, %v774
    %v776 = vrot.slane %v775, 1
    %v777 = vadd.f32 %v775, %v776
    %v778 = vadd.f32 %v734, %v736
    %v779 = vadd.f32 %v778, %v738
    %v780 = vadd.f32 %v779, %v740
    %v781 = vadd.f32 %v780, %v742
    %v782 = vadd.f32 %v781, %v744
    %v783 = vadd.f32 %v782, %v746
    %v784 = vadd.f32 %v783, %v748
    %v785 = vrot.slane %v784, 4
    %v786 = vadd.f32 %v784, %v785
    %v787 = vrot.slane %v786, 2
    %v788 = vadd.f32 %v786, %v787
    %v789 = vrot.slane %v788, 1
    %v790 = vadd.f32 %v788, %v789
    %v791 = vadd.f32 %v749, %v751
    %v792 = vadd.f32 %v791, %v753
    %v793 = vadd.f32 %v792, %v755
    %v794 = vadd.f32 %v793, %v757
    %v795 = vadd.f32 %v794, %v759
    %v796 = vadd.f32 %v795, %v761
    %v797 = vadd.f32 %v796, %v763
    %v798 = vrot.slane %v797, 4
    %v799 = vadd.f32 %v797, %v798
    %v800 = vrot.slane %v799, 2
    %v801 = vadd.f32 %v799, %v800
    %v802 = vrot.slane %v801, 1
    %v803 = vadd.f32 %v801, %v802
    %v804 = vadd.f32 %v750, %v752
    %v805 = vadd.f32 %v804, %v754
    %v806 = vadd.f32 %v805, %v756
    %v807 = vadd.f32 %v806, %v758
    %v808 = vadd.f32 %v807, %v760
    %v809 = vadd.f32 %v808, %v762
    %v810 = vadd.f32 %v809, %v764
    %v811 = vrot.slane %v810, 4
    %v812 = vadd.f32 %v810, %v811
    %v813 = vrot.slane %v812, 2
    %v814 = vadd.f32 %v812, %v813
    %v815 = vrot.slane %v814, 1
    %v816 = vadd.f32 %v814, %v815
    %v821 = vcombine.low %v777, %v790
    %v823 = vunpack.c.l.s4 1983009808
    %v824 = vunpack.c.0.s8 %v823
    %v825 = vlaneseq
    %v826 = vshrl.u32 %v825, 7
    %v827 = vsub.s32 %v824, %v826
    %v828 = vrot.slane %v821, %v827
    %v829 = vcombine.low %v803, %v816
    %v831 = vunpack.c.l.s4 1983009808
    %v832 = vunpack.c.0.s8 %v831
    %v833 = vlaneseq
    %v834 = vshrl.u32 %v833, 7
    %v835 = vsub.s32 %v832, %v834
    %v836 = vrot.slane %v829, %v835
    %vm837 = vcmask 1044484
    %v838 = vsel %vm837, %v828, %v828
    %vm839 = vcmask 1046534
    %v840 = vsel %vm839, %v828, %v838
    %v841 = vrot.slane %v836, 7
    %vm842 = vcmask 1041409
    %v843 = vsel %vm842, %v841, %v840
    %vm844 = vcmask 1043459
    %v845 = vsel %vm844, %v841, %v843
    %vm846 = vcmask 1045509
    %v847 = vsel %vm846, %v841, %v845
    %vm848 = vcmask 1047559
    %v849 = vsel %vm848, %v841, %v847
    %v851 = vadd.f32 %v732, %v849
    %852 = vst [vmem:[#allocation2] sm:$0xf] %v851
    // Predicated region
    $region86: #{tpu_custom_call.1} parent=1 // pred_check
      %p853 = pneg %p130
    $region87: #{tpu_custom_call.1} parent=1 // pred_check_branch
      %855 = sbr.rel (%p853) target = $region89
    $region88: #{tpu_custom_call.1} parent=1 // pred_region
      %v856 = vld [vmem:[#allocation2] sm:$0xf]
      %v857 = vmul.f32 %v856, 0.015625
      %v858 = vld [vmem:[#allocation3] sm:$0x3]
      %v859 = vpack.c.bf16 %v858, %v858
      %v860 = vld [vmem:[#allocation11] sm:$0xf]
      %v861 = vld [vmem:[#allocation12] sm:$0x1]
      %v863 = vlaneseq
      %v864 = vshrl.u32 %v863, 7
      %v865 = vsub.s32 0, %v864
      %v866 = vrot.slane %v861, %v865
      %vm868 = vcmask 64512
      %v870 = vsel %vm868, %v859, 0
      %vm872 = vcmask 1043456
      %v874 = vsel %vm872, %v860, 0
      %876 = vmatprep.subr.bf16.mxu0 0
      %877 = vmatpush1.bf16.msra.mxu0 %v874
      %878 = vmatprep.subr.bf16.mxu0 0
      %879 = vmatpush1.bf16.msra.mxu0 0
      %880 = vmatprep.subr.bf16.mxu0 0
      %881 = vmatpush1.bf16.msra.mxu0 0
      %882 = vmatprep.subr.bf16.mxu0 0
      %883 = vmatpush1.bf16.msra.mxu0 0
      %884 = vmatprep.subr.bf16.mxu0 0
      %885 = vmatpush1.bf16.msra.mxu0 0
      %886 = vmatprep.subr.bf16.mxu0 0
      %887 = vmatpush1.bf16.msra.mxu0 0
      %888 = vmatprep.subr.bf16.mxu0 0
      %889 = vmatpush1.bf16.msra.mxu0 0
      %890 = vmatprep.subr.bf16.mxu0 0
      %891 = vmatpush1.bf16.msra.mxu0 0
      %892 = vmatprep.subr.bf16.mxu0 0
      %893 = vmatpush1.bf16.msra.mxu0 0
      %894 = vmatprep.subr.bf16.mxu0 0
      %895 = vmatpush1.bf16.msra.mxu0 0
      %896 = vmatprep.subr.bf16.mxu0 0
      %897 = vmatpush1.bf16.msra.mxu0 0
      %898 = vmatprep.subr.bf16.mxu0 0
      %899 = vmatpush1.bf16.msra.mxu0 0
      %900 = vmatprep.subr.bf16.mxu0 0
      %901 = vmatpush1.bf16.msra.mxu0 0
      %902 = vmatprep.subr.bf16.mxu0 0
      %903 = vmatpush1.bf16.msra.mxu0 0
      %904 = vmatprep.subr.bf16.mxu0 0
      %905 = vmatpush1.bf16.msra.mxu0 0
      %906 = vmatprep.subr.bf16.mxu0 0
      %907 = vmatpush1.bf16.msra.mxu0 0
      %908 = vmatprep.mubr.bf16.mxu0 0
      %909 = vmatmul.mubr.bf16.gmra.mrb[0].mxu0 %v870
      %v910 = vpop.f32.mrb[0].mxu0
      %v911 = vadd.f32 %v866, %v910
      %v912 = vpop.f32.mrb[0].mxu0
      %v913 = vpop.f32.mrb[0].mxu0
      %v914 = vpop.f32.mrb[0].mxu0
      %915 = vdwg.mxu0
      %v916 = vpack.c.bf16 %v911, %v911
      %v917 = vxor.u32 %v916, 2147516416
      %v919 = vmul.bf16 %v917, 1069105081
      %v920 = vpow.bf16.pop %v919
      %v921 = vadd.bf16 %v920, 1065369472
      %v922 = vrcp.bf16.pop %v921
      %v923 = vmul.bf16 1065369472, %v922
      %v924 = vmul.bf16 %v916, %v923
      %v925 = vld [vmem:[%s8] sm:$0xf]
      %v926 = vld [vmem:[%s8 + $0x4] sm:$0xf]
      %v927 = vld [vmem:[%s8 + $0x8] sm:$0xf]
      %v928 = vld [vmem:[%s8 + $0xc] sm:$0xf]
      %v929 = vld [vmem:[#allocation14] sm:$0x1]
      %v931 = vlaneseq
      %v932 = vshrl.u32 %v931, 7
      %v933 = vsub.s32 0, %v932
      %v934 = vrot.slane %v929, %v933
      %v940 = vunpack.c.l.b16 %v925
      %v941 = vunpack.c.l.b16 %v926
      %v942 = vunpack.c.l.b16 %v927
      %v943 = vunpack.c.l.b16 %v928
      %v944 = vpack.c.b16 %v941, %v940
      %v945 = vpack.c.b16 %v943, %v942
      %v949 = vsel %vm450, %v924, 0
      %951 = vmatprep.subr.bf16.mxu0 0
      %952 = vmatpush1.bf16.msra.mxu0 %v944
      %953 = vmatprep.subr.bf16.mxu0 0
      %954 = vmatpush1.bf16.msra.mxu0 %v945
      %955 = vmatprep.subr.bf16.mxu0 0
      %956 = vmatpush1.bf16.msra.mxu0 0
      %957 = vmatprep.subr.bf16.mxu0 0
      %958 = vmatpush1.bf16.msra.mxu0 0
      %959 = vmatprep.subr.bf16.mxu0 0
      %960 = vmatpush1.bf16.msra.mxu0 0
      %961 = vmatprep.subr.bf16.mxu0 0
      %962 = vmatpush1.bf16.msra.mxu0 0
      %963 = vmatprep.subr.bf16.mxu0 0
      %964 = vmatpush1.bf16.msra.mxu0 0
      %965 = vmatprep.subr.bf16.mxu0 0
      %966 = vmatpush1.bf16.msra.mxu0 0
      %967 = vmatprep.subr.bf16.mxu0 0
      %968 = vmatpush1.bf16.msra.mxu0 0
      %969 = vmatprep.subr.bf16.mxu0 0
      %970 = vmatpush1.bf16.msra.mxu0 0
      %971 = vmatprep.subr.bf16.mxu0 0
      %972 = vmatpush1.bf16.msra.mxu0 0
      %973 = vmatprep.subr.bf16.mxu0 0
      %974 = vmatpush1.bf16.msra.mxu0 0
      %975 = vmatprep.subr.bf16.mxu0 0
      %976 = vmatpush1.bf16.msra.mxu0 0
      %977 = vmatprep.subr.bf16.mxu0 0
      %978 = vmatpush1.bf16.msra.mxu0 0
      %979 = vmatprep.subr.bf16.mxu0 0
      %980 = vmatpush1.bf16.msra.mxu0 0
      %981 = vmatprep.subr.bf16.mxu0 0
      %982 = vmatpush1.bf16.msra.mxu0 0
      %983 = vmatprep.mubr.bf16.mxu0 0
      %984 = vmatmul.mubr.bf16.gmra.mrb[0].mxu0 %v949
      %v985 = vpop.f32.mrb[0].mxu0
      %v986 = vadd.f32 %v934, %v985
      %v987 = vpop.f32.mrb[0].mxu0
      %v988 = vpop.f32.mrb[0].mxu0
      %v989 = vpop.f32.mrb[0].mxu0
      %990 = vdwg.mxu0
      %v991 = vpack.c.bf16 %v986, %v986
      %v992 = vxor.u32 %v991, 2147516416
      %v994 = vmul.bf16 %v992, 1069105081
      %v995 = vpow.bf16.pop %v994
      %v996 = vadd.bf16 %v995, 1065369472
      %v997 = vrcp.bf16.pop %v996
      %v998 = vmul.bf16 1065369472, %v997
      %v999 = vmul.bf16 %v991, %v998
      %v1002 = vunpack.c.l.s4 1983009808
      %v1003 = vunpack.c.0.s8 %v1002
      %v1004 = vlaneseq
      %v1005 = vshrl.u32 %v1004, 7
      %v1006 = vsub.s32 %v1003, %v1005
      %v1007 = vrot.slane %v857, %v1006
      %v1008 = vcombine.high %v1007, %v1007
      %v1011 = vpack.c.bf16 %v1007, %v1007
      %v1012 = vpack.c.bf16 %v1008, %v1008
      %v1013 = vld [vmem:[%s10] sm:$0xf]
      %v1014 = vld [vmem:[%s10 + $0x4] sm:$0xf]
      %v1015 = vld [vmem:[%s10 + $0x8] sm:$0xf]
      %v1016 = vld [vmem:[%s10 + $0xc] sm:$0xf]
      %v1017 = vld [vmem:[%s10 + $0x10] sm:$0xf]
      %v1018 = vld [vmem:[%s10 + $0x14] sm:$0xf]
      %v1019 = vld [vmem:[%s10 + $0x18] sm:$0xf]
      %v1020 = vld [vmem:[%s10 + $0x1c] sm:$0xf]
      %v1021 = vld [vmem:[%s10 + $0x20] sm:$0xf]
      %v1022 = vld [vmem:[%s10 + $0x24] sm:$0xf]
      %v1023 = vld [vmem:[%s10 + $0x28] sm:$0xf]
      %v1024 = vld [vmem:[%s10 + $0x2c] sm:$0xf]
      %v1025 = vld [vmem:[%s10 + $0x30] sm:$0xf]
      %v1026 = vld [vmem:[%s10 + $0x34] sm:$0xf]
      %v1027 = vld [vmem:[%s10 + $0x38] sm:$0xf]
      %v1028 = vld [vmem:[%s10 + $0x3c] sm:$0xf]
      %v1029 = vld [vmem:[%s10 + $0x40] sm:$0xf]
      %v1030 = vld [vmem:[%s10 + $0x44] sm:$0xf]
      %v1031 = vld [vmem:[%s10 + $0x48] sm:$0xf]
      %v1032 = vld [vmem:[%s10 + $0x4c] sm:$0xf]
      %v1033 = vld [vmem:[%s10 + $0x50] sm:$0xf]
      %v1034 = vld [vmem:[%s10 + $0x54] sm:$0xf]
      %v1035 = vld [vmem:[%s10 + $0x58] sm:$0xf]
      %v1036 = vld [vmem:[%s10 + $0x5c] sm:$0xf]
      %v1037 = vld [vmem:[%s10 + $0x60] sm:$0xf]
      %v1038 = vld [vmem:[%s10 + $0x64] sm:$0xf]
      %v1039 = vld [vmem:[%s10 + $0x68] sm:$0xf]
      %v1040 = vld [vmem:[%s10 + $0x6c] sm:$0xf]
      %v1041 = vld [vmem:[%s10 + $0x70] sm:$0xf]
      %v1042 = vld [vmem:[%s10 + $0x74] sm:$0xf]
      %v1043 = vld [vmem:[%s10 + $0x78] sm:$0xf]
      %v1044 = vld [vmem:[%s10 + $0x7c] sm:$0xf]
      %v1045 = vld [vmem:[%s11] sm:$0xf]
      %v1046 = vld [vmem:[%s11 + $0x4] sm:$0xf]
      %v1049 = vunpack.c.l.b16 %v1045
      %v1050 = vunpack.c.l.b16 %v1046
      %v1051 = vpack.c.b16 %v1050, %v1049
      %vm1053 = vcmask 130048
      %v1055 = vsel %vm1053, %v999, 0
      %1057 = vmatprep.subr.bf16.mxu0 0
      %1058 = vmatpush1.bf16.msra.mxu0 %v1051
      %1059 = vmatprep.subr.bf16.mxu0 0
      %1060 = vmatpush1.bf16.msra.mxu0 0
      %1061 = vmatprep.subr.bf16.mxu0 0
      %1062 = vmatpush1.bf16.msra.mxu0 0
      %1063 = vmatprep.subr.bf16.mxu0 0
      %1064 = vmatpush1.bf16.msra.mxu0 0
      %1065 = vmatprep.subr.bf16.mxu0 0
      %1066 = vmatpush1.bf16.msra.mxu0 0
      %1067 = vmatprep.subr.bf16.mxu0 0
      %1068 = vmatpush1.bf16.msra.mxu0 0
      %1069 = vmatprep.subr.bf16.mxu0 0
      %1070 = vmatpush1.bf16.msra.mxu0 0
      %1071 = vmatprep.subr.bf16.mxu0 0
      %1072 = vmatpush1.bf16.msra.mxu0 0
      %1073 = vmatprep.subr.bf16.mxu0 0
      %1074 = vmatpush1.bf16.msra.mxu0 0
      %1075 = vmatprep.subr.bf16.mxu0 0
      %1076 = vmatpush1.bf16.msra.mxu0 0
      %1077 = vmatprep.subr.bf16.mxu0 0
      %1078 = vmatpush1.bf16.msra.mxu0 0
      %1079 = vmatprep.subr.bf16.mxu0 0
      %1080 = vmatpush1.bf16.msra.mxu0 0
      %1081 = vmatprep.subr.bf16.mxu0 0
      %1082 = vmatpush1.bf16.msra.mxu0 0
      %1083 = vmatprep.subr.bf16.mxu0 0
      %1084 = vmatpush1.bf16.msra.mxu0 0
      %1085 = vmatprep.subr.bf16.mxu0 0
      %1086 = vmatpush1.bf16.msra.mxu0 0
      %1087 = vmatprep.subr.bf16.mxu0 0
      %1088 = vmatpush1.bf16.msra.mxu0 0
      %1089 = vmatprep.mubr.bf16.mxu0 0
      %1090 = vmatmul.mubr.bf16.gmra.mrb[0].mxu0 %v1055
      %v1091 = vpop.f32.mrb[0].mxu0
      %v1092 = vadd.f32 0.0, %v1091
      %v1093 = vpop.f32.mrb[0].mxu0
      %v1094 = vpop.f32.mrb[0].mxu0
      %v1095 = vpop.f32.mrb[0].mxu0
      %1096 = vdwg.mxu0
      %v1129 = vunpack.c.l.b16 %v1013
      %v1130 = vunpack.c.l.b16 %v1014
      %v1131 = vunpack.c.l.b16 %v1015
      %v1132 = vunpack.c.l.b16 %v1016
      %v1133 = vunpack.c.l.b16 %v1017
      %v1134 = vunpack.c.l.b16 %v1018
      %v1135 = vunpack.c.l.b16 %v1019
      %v1136 = vunpack.c.l.b16 %v1020
      %v1137 = vunpack.c.l.b16 %v1021
      %v1138 = vunpack.c.l.b16 %v1022
      %v1139 = vunpack.c.l.b16 %v1023
      %v1140 = vunpack.c.l.b16 %v1024
      %v1141 = vunpack.c.l.b16 %v1025
      %v1142 = vunpack.c.l.b16 %v1026
      %v1143 = vunpack.c.l.b16 %v1027
      %v1144 = vunpack.c.l.b16 %v1028
      %v1145 = vunpack.c.l.b16 %v1029
      %v1146 = vunpack.c.l.b16 %v1030
      %v1147 = vunpack.c.l.b16 %v1031
      %v1148 = vunpack.c.l.b16 %v1032
      %v1149 = vunpack.c.l.b16 %v1033
      %v1150 = vunpack.c.l.b16 %v1034
      %v1151 = vunpack.c.l.b16 %v1035
      %v1152 = vunpack.c.l.b16 %v1036
      %v1153 = vunpack.c.l.b16 %v1037
      %v1154 = vunpack.c.l.b16 %v1038
      %v1155 = vunpack.c.l.b16 %v1039
      %v1156 = vunpack.c.l.b16 %v1040
      %v1157 = vunpack.c.l.b16 %v1041
      %v1158 = vunpack.c.l.b16 %v1042
      %v1159 = vunpack.c.l.b16 %v1043
      %v1160 = vunpack.c.l.b16 %v1044
      %v1161 = vpack.c.b16 %v1130, %v1129
      %v1162 = vpack.c.b16 %v1132, %v1131
      %v1163 = vpack.c.b16 %v1134, %v1133
      %v1164 = vpack.c.b16 %v1136, %v1135
      %v1165 = vpack.c.b16 %v1138, %v1137
      %v1166 = vpack.c.b16 %v1140, %v1139
      %v1167 = vpack.c.b16 %v1142, %v1141
      %v1168 = vpack.c.b16 %v1144, %v1143
      %v1169 = vpack.c.b16 %v1146, %v1145
      %v1170 = vpack.c.b16 %v1148, %v1147
      %v1171 = vpack.c.b16 %v1150, %v1149
      %v1172 = vpack.c.b16 %v1152, %v1151
      %v1173 = vpack.c.b16 %v1154, %v1153
      %v1174 = vpack.c.b16 %v1156, %v1155
      %v1175 = vpack.c.b16 %v1158, %v1157
      %v1176 = vpack.c.b16 %v1160, %v1159
      %1193 = vmatprep.subr.bf16.mxu0 0
      %1194 = vmatpush1.bf16.msra.mxu0 %v1161
      %1195 = vmatprep.subr.bf16.mxu0 0
      %1196 = vmatpush1.bf16.msra.mxu0 %v1162
      %1197 = vmatprep.subr.bf16.mxu0 0
      %1198 = vmatpush1.bf16.msra.mxu0 %v1163
      %1199 = vmatprep.subr.bf16.mxu0 0
      %1200 = vmatpush1.bf16.msra.mxu0 %v1164
      %1201 = vmatprep.subr.bf16.mxu0 0
      %1202 = vmatpush1.bf16.msra.mxu0 %v1165
      %1203 = vmatprep.subr.bf16.mxu0 0
      %1204 = vmatpush1.bf16.msra.mxu0 %v1166
      %1205 = vmatprep.subr.bf16.mxu0 0
      %1206 = vmatpush1.bf16.msra.mxu0 %v1167
      %1207 = vmatprep.subr.bf16.mxu0 0
      %1208 = vmatpush1.bf16.msra.mxu0 %v1168
      %1209 = vmatprep.subr.bf16.mxu0 0
      %1210 = vmatpush1.bf16.msra.mxu0 %v1169
      %1211 = vmatprep.subr.bf16.mxu0 0
      %1212 = vmatpush1.bf16.msra.mxu0 %v1170
      %1213 = vmatprep.subr.bf16.mxu0 0
      %1214 = vmatpush1.bf16.msra.mxu0 %v1171
      %1215 = vmatprep.subr.bf16.mxu0 0
      %1216 = vmatpush1.bf16.msra.mxu0 %v1172
      %1217 = vmatprep.subr.bf16.mxu0 0
      %1218 = vmatpush1.bf16.msra.mxu0 %v1173
      %1219 = vmatprep.subr.bf16.mxu0 0
      %1220 = vmatpush1.bf16.msra.mxu0 %v1174
      %1221 = vmatprep.subr.bf16.mxu0 0
      %1222 = vmatpush1.bf16.msra.mxu0 %v1175
      %1223 = vmatprep.subr.bf16.mxu0 0
      %1224 = vmatpush1.bf16.msra.mxu0 %v1176
      %1225 = vmatprep.mubr.bf16.mxu0 %v1012
      %1226 = vmatmul.mubr.bf16.gmra.mrb[0].mxu0 %v1011
      %v1227 = vpop.f32.mrb[0].mxu0
      %v1228 = vadd.f32 %v1092, %v1227
      %v1229 = vpop.f32.mrb[0].mxu0
      %v1230 = vpop.f32.mrb[0].mxu0
      %v1231 = vpop.f32.mrb[0].mxu0
      %1232 = vdwg.mxu0
      %v1233 = vld [vmem:[%s12] sm:$0x1]
      %v1235 = vlaneseq
      %v1236 = vshrl.u32 %v1235, 7
      %v1237 = vsub.s32 0, %v1236
      %v1238 = vrot.slane %v1233, %v1237
      %v1240 = vadd.f32 %v1228, %v1238
      %1241 = vst [vmem:[#allocation15] sm:$0x3] %v1240
    $region89: #{tpu_custom_call.1} parent=1 // pred_fallthru
      _
    // Predicated region
    $region90: #{tpu_custom_call.1} parent=1 // pred_check
      _
    $region91: #{tpu_custom_call.1} parent=1 // pred_check_branch
      %1243 = sbr.rel (0) target = $region93
    $region92: #{tpu_custom_call.1} parent=1 // pred_region
      %s1245 = ssub.s32 32, 32
      %1246 = vsyncadd [#allocation5], %s1245
      %s1248 = sshll.u32 [#allocation15], 4
      %s1249 = int_to_ptr.vmem [resolvable:$true] %s1248
      %1251 = dma.vmem_to_hbm [thread:$0]  %s1249, 32, %s13, [#allocation5]
    $region93: #{tpu_custom_call.1} parent=1 // pred_fallthru
      _
    // Predicated region
    $region94: #{tpu_custom_call.1} parent=1 // pred_check
      _
    $region95: #{tpu_custom_call.1} parent=1 // pred_check_branch
      %1253 = sbr.rel (0) target = $region97
    $region96: #{tpu_custom_call.1} parent=1 // pred_region
      %1254 = dma.done [#allocation5], 32
    $region97: #{tpu_custom_call.1} parent=1 // pred_fallthru
      _
    %1255 = vsyncpa [#allocation4], 1
    %1256 = vsyncpa [#allocation7], 1
    %1257 = vsyncpa [#allocation10], 1
    %1258 = vsyncpa [#allocation13], 1
    %1259 = vsyncpa [#allocation5], 1

</llo_original>
